<compile_context>
chip_gen: v6e
topology: v6e:2x2x1
jax: 0.10.0
libtpu: 0.0.40
codegen_flags: <defaults>
</compile_context>

<pallas_src>
import math
import jax
import jax.numpy as jnp
from jax.experimental import pallas as pl
from jax.experimental.pallas import tpu as pltpu

B, S, D, H, DFF = 2, 8, 32, 4, 64            # batch, seq, hidden, heads, ffn hidden
DH = D // H
EPS = 1e-6
NEG = -1e30                                   # additive key-padding mask value


def _layernorm(x, a, b):
    # PyTorch LayerNorm-as-written: unbiased std, divide by (std + eps)
    mean = jnp.mean(x, axis=-1, keepdims=True)
    var = jnp.sum((x - mean) ** 2, axis=-1, keepdims=True) * (1.0 / (x.shape[-1] - 1))
    std = jnp.sqrt(var)
    # approx=True would move the reciprocal to the EUP slot at a ~1e-3 accuracy cost.
    return a * (x - mean) * pl.reciprocal(std + EPS, approx=False) + b


def _gelu(x):
    return 0.5 * x * (1.0 + jnp.tanh(math.sqrt(2.0 / math.pi)
                                     * (x + 0.044715 * x ** 3)))


def fused_block_kernel(x_ref, bias_ref, pv_ref, wqkv_ref, wo_ref, w1_ref, w2_ref, out_ref):
    """Whole EncodeTransformerBlock forward in one grid step.

    out1[b] = x[b] + MHA(LN1(x[b]))          (per-batch self-attention)
    out [b] = out1[b] + FFN(LN2(out1[0]))    (FFN of batch 0, broadcast-added — the
                                              SublayerConnection `[0]` quirk)
    """
    x = x_ref[...]                                       # (B, S, D)
    pv = pv_ref[...]                                     # (8, 128) packed small params

    ln1_a, ln1_b = pv[0:1, 0:D], pv[1:2, 0:D]
    b_qkv        = pv[2:3, 0:3 * D]                      # head-major, q part pre-scaled
    bo           = pv[3:4, 0:D]
    ln2_a, ln2_b = pv[4:5, 0:D], pv[5:6, 0:D]
    b1           = pv[6:7, 0:DFF]
    b2           = pv[7:8, 0:D]

    # ---- sublayer 1: pre-LN + fused (head-major, pre-scaled) QKV projection --------------
    x2 = x.reshape(B * S, D)
    xn = _layernorm(x2, ln1_a, ln1_b)
    qkv = jnp.dot(xn, wqkv_ref[...],
                  preferred_element_type=jnp.float32) + b_qkv          # (B*S, 3D)

    # Head-major columns: [q_h | k_h | v_h] per contiguous 3*DH-lane window.  Build the
    # (H*B, S, 3*DH) batch stack with H lane slices + one leading-axis concat (no
    # sublane transpose/relayout needed).
    qkv3 = qkv.reshape(B, S, 3 * D)
    qkv_hb = jnp.concatenate(
        [qkv3[:, :, h * 3 * DH:(h + 1) * 3 * DH] for h in range(H)], axis=0)   # (H*B,S,3DH)
    q = qkv_hb[:, :, 0:DH]               # 1/sqrt(DH) already folded into weights/bias
    k = qkv_hb[:, :, DH:2 * DH]
    v = qkv_hb[:, :, 2 * DH:3 * DH]

    # One batched score / softmax / context pass over ALL (head, batch) pairs.
    scores = jnp.einsum('bqd,bkd->bqk', q, k,
                        preferred_element_type=jnp.float32)             # (H*B, S, S)
    scores = scores + bias_ref[...]                                     # (H*B, 1, S) bias, added once
    scores = scores - jnp.max(scores, axis=-1, keepdims=True)           # keeps exp() finite w/ -1e30 mask
    p = jnp.exp(scores)
    # approx=True would offload to the EUP at ~1e-3 relative error; exact kept for parity.
    p = p * pl.reciprocal(jnp.sum(p, axis=-1, keepdims=True), approx=False)
    ctx = jnp.einsum('bqk,bkd->bqd', p, v,
                     preferred_element_type=jnp.float32)                # (H*B, S, DH)

    # Re-pack heads onto lanes -> (B*S, D), then ONE fused out-projection matmul (+ bo).
    ctx2 = jnp.concatenate([ctx[h * B:(h + 1) * B] for h in range(H)], axis=-1)  # (B, S, D)
    attn = jnp.dot(ctx2.reshape(B * S, D), wo_ref[...],
                   preferred_element_type=jnp.float32) + bo
    out1 = x2 + attn                                                     # (B*S, D)

    # ---- sublayer 2: FFN computed ONCE on batch 0, broadcast-added (the `[0]` quirk) -----
    ffn_in = _layernorm(out1[0:S, :], ln2_a, ln2_b)
    h1 = _gelu(jnp.dot(ffn_in, w1_ref[...],
                       preferred_element_type=jnp.float32) + b1)
    ff = jnp.dot(h1, w2_ref[...],
                 preferred_element_type=jnp.float32) + b2                # (S, D)

    # Single store of the whole output slab.
    out_ref[...] = out1.reshape(B, S, D) + ff[None, :, :]


def encode_transformer_block(inputs, mask, params):
    # key_padding_mask: True => ignore that key position (torch bool semantics).
    # Pre-tile to (H*B, 1, S) so the kernel adds the bias exactly once, in (head, batch) order.
    bias_b = jnp.where(mask, NEG, 0.0).astype(jnp.float32)[:, None, :]   # (B, 1, S)
    bias_hb = jnp.tile(bias_b, (H, 1, 1))                                # (H*B, 1, S)

    return pl.pallas_call(
        fused_block_kernel,
        out_shape=jax.ShapeDtypeStruct((B, S, D), jnp.float32),
        grid=(1,),   # single fused invocation: entire working set (~50 KB) fits in VMEM
        in_specs=[
            pl.BlockSpec((B, S, D), lambda i: (0, 0, 0)),       # x
            pl.BlockSpec((H * B, 1, S), lambda i: (0, 0, 0)),   # key-padding bias (head,batch)
            pl.BlockSpec((8, 128), lambda i: (0, 0)),           # packed small params
            pl.BlockSpec((D, 3 * D), lambda i: (0, 0)),         # fused QKV weight (head-major)
            pl.BlockSpec((D, D), lambda i: (0, 0)),             # attention out-proj weight
            pl.BlockSpec((D, DFF), lambda i: (0, 0)),           # FFN w1
            pl.BlockSpec((DFF, D), lambda i: (0, 0)),           # FFN w2
        ],
        out_specs=pl.BlockSpec((B, S, D), lambda i: (0, 0, 0)),
        compiler_params=pltpu.CompilerParams(dimension_semantics=("arbitrary",)),
    )(inputs, bias_hb, params["packed"], params["w_qkv"], params["wo"],
      params["w1"], params["w2"])


# --------------------------- host-side parameter handling ---------------------------------

def init_raw_params(key):
    """Raw parameters in PyTorch layout."""
    ks = jax.random.split(key, 8)

    def nrm(k, shape, scale=0.05):
        return (scale * jax.random.normal(k, shape)).astype(jnp.float32)

    return dict(
        ln1_a=jnp.ones((D,), jnp.float32), ln1_b=jnp.zeros((D,), jnp.float32),
        ln2_a=jnp.ones((D,), jnp.float32), ln2_b=jnp.zeros((D,), jnp.float32),
        in_proj_w=nrm(ks[0], (3 * D, D)),      # nn.MultiheadAttention.in_proj_weight
        in_proj_b=nrm(ks[1], (3 * D,)),
        out_proj_w=nrm(ks[2], (D, D)),
        out_proj_b=nrm(ks[3], (D,)),
        w1=nrm(ks[4], (DFF, D)), b1=nrm(ks[5], (DFF,)),   # nn.Linear(d_model, d_ff)
        w2=nrm(ks[6], (D, DFF)), b2=nrm(ks[7], (D,)),     # nn.Linear(d_ff, d_model)
    )


def prepare_params(rp):
    """Free host-side transforms: head-major QKV columns, folded 1/sqrt(DH) scale,
    transposed weights (so kernel computes y = x @ W + b), packed small vectors."""
    scale = 1.0 / math.sqrt(DH)
    scales = jnp.array([scale, 1.0, 1.0], jnp.float32)           # scale only the q third
    w4 = rp["in_proj_w"].reshape(3, H, DH, D) * scales[:, None, None, None]
    b4 = rp["in_proj_b"].reshape(3, H, DH) * scales[:, None, None]
    # columns ordered [q_h0 k_h0 v_h0 | q_h1 k_h1 v_h1 | ...]
    w_qkv = jnp.transpose(w4, (1, 0, 2, 3)).reshape(3 * D, D).T  # (D, 3D)
    b_qkv = jnp.transpose(b4, (1, 0, 2)).reshape(3 * D)

    packed = jnp.zeros((8, 128), jnp.float32)
    packed = packed.at[0, :D].set(rp["ln1_a"])
    packed = packed.at[1, :D].set(rp["ln1_b"])
    packed = packed.at[2, :3 * D].set(b_qkv)
    packed = packed.at[3, :D].set(rp["out_proj_b"])
    packed = packed.at[4, :D].set(rp["ln2_a"])
    packed = packed.at[5, :D].set(rp["ln2_b"])
    packed = packed.at[6, :DFF].set(rp["b1"])
    packed = packed.at[7, :D].set(rp["b2"])

    return dict(packed=packed, w_qkv=w_qkv,
                wo=rp["out_proj_w"].T, w1=rp["w1"].T, w2=rp["w2"].T)


# ------------------------------ pure-JAX reference (for checking) -------------------------

def reference_forward(x, mask, rp):
    def ln(t, a, b):
        mean = jnp.mean(t, axis=-1, keepdims=True)
        var = jnp.sum((t - mean) ** 2, axis=-1, keepdims=True) / (t.shape[-1] - 1)
        return a * (t - mean) / (jnp.sqrt(var) + EPS) + b

    def gelu(t):
        return 0.5 * t * (1.0 + jnp.tanh(math.sqrt(2.0 / math.pi) * (t + 0.044715 * t ** 3)))

    xn = ln(x, rp["ln1_a"], rp["ln1_b"])
    qkv = jnp.einsum('bsd,ed->bse', xn, rp["in_proj_w"]) + rp["in_proj_b"]
    q, k, v = qkv[..., :D], qkv[..., D:2 * D], qkv[..., 2 * D:]
    q = q / math.sqrt(DH)

    def split(t):
        return t.reshape(B, S, H, DH).transpose(0, 2, 1, 3)

    qh, kh, vh = split(q), split(k), split(v)
    scores = jnp.einsum('bhqd,bhkd->bhqk', qh, kh)
    scores = scores + jnp.where(mask, NEG, 0.0)[:, None, None, :]
    p = jax.nn.softmax(scores, axis=-1)
    ctx = jnp.einsum('bhqk,bhkd->bhqd', p, vh).transpose(0, 2, 1, 3).reshape(B, S, D)
    attn = jnp.einsum('bsd,ed->bse', ctx, rp["out_proj_w"]) + rp["out_proj_b"]
    out1 = x + attn
    y = ln(out1, rp["ln2_a"], rp["ln2_b"])
    h1 = gelu(jnp.einsum('bsd,fd->bsf', y, rp["w1"]) + rp["b1"])
    ff = jnp.einsum('bsf,df->bsd', h1, rp["w2"]) + rp["b2"]
    return out1 + ff[0]                      # SublayerConnection `[0]` broadcast quirk


if __name__ == "__main__":
    key = jax.random.PRNGKey(0)
    kx, kp = jax.random.split(key)
    inputs = jax.random.normal(kx, (B, S, D), dtype=jnp.float32)
    # key_padding_mask: pad out the last two positions of batch 1
    mask = jnp.zeros((B, S), dtype=bool).at[1, S - 2:].set(True)

    raw = init_raw_params(kp)
    params = prepare_params(raw)

    out = encode_transformer_block(inputs, mask, params)
    jax.block_until_ready(out)

    ref = reference_forward(inputs, mask, raw)
    err = float(jnp.max(jnp.abs(out - ref)))

    assert out.shape == (B, S, D) and out.dtype == jnp.float32
    assert bool(jnp.all(jnp.isfinite(out)))
    assert err < 2e-3, f"mismatch vs pure-JAX reference: {err}"
    print("KERNEL_OK")
</pallas_src>

<mosaic_0001>
module attributes {stable_mosaic.version = 11 : i64} {
  func.func @fused_block_kernel(%arg0: i32, %arg1: memref<2x8x32xf32, #tpu.memory_space<vmem>>, %arg2: memref<8x1x8xf32, #tpu.memory_space<vmem>>, %arg3: memref<8x128xf32, #tpu.memory_space<vmem>>, %arg4: memref<32x96xf32, #tpu.memory_space<vmem>>, %arg5: memref<32x32xf32, #tpu.memory_space<vmem>>, %arg6: memref<32x64xf32, #tpu.memory_space<vmem>>, %arg7: memref<64x32xf32, #tpu.memory_space<vmem>>, %arg8: memref<2x8x32xf32, #tpu.memory_space<vmem>>) attributes {dimension_semantics = [#tpu.dimension_semantics<arbitrary>], iteration_bounds = array<i64: 1>, scalar_prefetch = 0 : i64, scratch_operands = 0 : i64, tpu.core_type = #tpu.core_type<tc>, window_params = [{pipeline_mode = #tpu.pipeline_mode<synchronous>, transform_indices = @transform_0, window_bounds = array<i64: 2, 8, 32>}, {pipeline_mode = #tpu.pipeline_mode<synchronous>, transform_indices = @transform_1, window_bounds = array<i64: 8, 1, 8>}, {pipeline_mode = #tpu.pipeline_mode<synchronous>, transform_indices = @transform_2, window_bounds = array<i64: 8, 128>}, {pipeline_mode = #tpu.pipeline_mode<synchronous>, transform_indices = @transform_3, window_bounds = array<i64: 32, 96>}, {pipeline_mode = #tpu.pipeline_mode<synchronous>, transform_indices = @transform_4, window_bounds = array<i64: 32, 32>}, {pipeline_mode = #tpu.pipeline_mode<synchronous>, transform_indices = @transform_5, window_bounds = array<i64: 32, 64>}, {pipeline_mode = #tpu.pipeline_mode<synchronous>, transform_indices = @transform_6, window_bounds = array<i64: 64, 32>}, {pipeline_mode = #tpu.pipeline_mode<synchronous>, transform_indices = @transform_7, window_bounds = array<i64: 2, 8, 32>}]} {
    %c0 = arith.constant 0 : index
    %c0_0 = arith.constant 0 : index
    %c0_1 = arith.constant 0 : index
    %0 = vector.load %arg1[%c0, %c0_0, %c0_1] : memref<2x8x32xf32, #tpu.memory_space<vmem>>, vector<2x8x32xf32>
    %c0_2 = arith.constant 0 : index
    %c0_3 = arith.constant 0 : index
    %1 = vector.load %arg3[%c0_2, %c0_3] : memref<8x128xf32, #tpu.memory_space<vmem>>, vector<8x128xf32>
    %2 = vector.extract_strided_slice %1 {offsets = [0, 0], sizes = [1, 32], strides = [1, 1]} : vector<8x128xf32> to vector<1x32xf32>
    %3 = vector.extract_strided_slice %1 {offsets = [1, 0], sizes = [1, 32], strides = [1, 1]} : vector<8x128xf32> to vector<1x32xf32>
    %4 = vector.extract_strided_slice %1 {offsets = [2, 0], sizes = [1, 96], strides = [1, 1]} : vector<8x128xf32> to vector<1x96xf32>
    %5 = vector.extract_strided_slice %1 {offsets = [3, 0], sizes = [1, 32], strides = [1, 1]} : vector<8x128xf32> to vector<1x32xf32>
    %6 = vector.extract_strided_slice %1 {offsets = [4, 0], sizes = [1, 32], strides = [1, 1]} : vector<8x128xf32> to vector<1x32xf32>
    %7 = vector.extract_strided_slice %1 {offsets = [5, 0], sizes = [1, 32], strides = [1, 1]} : vector<8x128xf32> to vector<1x32xf32>
    %8 = vector.extract_strided_slice %1 {offsets = [6, 0], sizes = [1, 64], strides = [1, 1]} : vector<8x128xf32> to vector<1x64xf32>
    %9 = vector.extract_strided_slice %1 {offsets = [7, 0], sizes = [1, 32], strides = [1, 1]} : vector<8x128xf32> to vector<1x32xf32>
    %10 = vector.shape_cast %0 : vector<2x8x32xf32> to vector<16x32xf32>
    %cst = arith.constant dense<0.000000e+00> : vector<16xf32>
    %11 = vector.multi_reduction <add>, %10, %cst [1] : vector<16x32xf32> to vector<16xf32>
    %12 = vector.shape_cast %11 : vector<16xf32> to vector<16x1xf32>
    %cst_4 = arith.constant 3.200000e+01 : f32
    %13 = vector.broadcast %cst_4 : f32 to vector<16x1xf32>
    %14 = arith.divf %12, %13 : vector<16x1xf32>
    %15 = vector.broadcast %14 : vector<16x1xf32> to vector<16x32xf32>
    %16 = arith.subf %10, %15 : vector<16x32xf32>
    %17 = arith.mulf %16, %16 : vector<16x32xf32>
    %cst_5 = arith.constant dense<0.000000e+00> : vector<16xf32>
    %18 = vector.multi_reduction <add>, %17, %cst_5 [1] : vector<16x32xf32> to vector<16xf32>
    %19 = vector.shape_cast %18 : vector<16xf32> to vector<16x1xf32>
    %cst_6 = arith.constant 0.0322580636 : f32
    %20 = vector.broadcast %cst_6 : f32 to vector<16x1xf32>
    %21 = arith.mulf %19, %20 : vector<16x1xf32>
    %22 = math.sqrt %21 : vector<16x1xf32>
    %23 = vector.broadcast %14 : vector<16x1xf32> to vector<16x32xf32>
    %24 = arith.subf %10, %23 : vector<16x32xf32>
    %25 = vector.broadcast %2 : vector<1x32xf32> to vector<16x32xf32>
    %26 = arith.mulf %25, %24 : vector<16x32xf32>
    %cst_7 = arith.constant 9.99999997E-7 : f32
    %27 = vector.broadcast %cst_7 : f32 to vector<16x1xf32>
    %28 = arith.addf %22, %27 : vector<16x1xf32>
    %29 = tpu.reciprocal %28 : vector<16x1xf32> -> vector<16x1xf32>
    %30 = vector.broadcast %29 : vector<16x1xf32> to vector<16x32xf32>
    %31 = arith.mulf %26, %30 : vector<16x32xf32>
    %32 = vector.broadcast %3 : vector<1x32xf32> to vector<16x32xf32>
    %33 = arith.addf %31, %32 : vector<16x32xf32>
    %c0_8 = arith.constant 0 : index
    %c0_9 = arith.constant 0 : index
    %34 = vector.load %arg4[%c0_8, %c0_9] : memref<32x96xf32, #tpu.memory_space<vmem>>, vector<32x96xf32>
    %cst_10 = arith.constant dense<0.000000e+00> : vector<16x96xf32>
    %35 = tpu.matmul %33, %34, %cst_10 {dimension_numbers = #tpu.dot_dimension_numbers<[1], [0], [0], [1], [0, 0, 1, 1], [], []>} : vector<16x32xf32>, vector<32x96xf32>, vector<16x96xf32> -> vector<16x96xf32>
    %36 = vector.broadcast %4 : vector<1x96xf32> to vector<16x96xf32>
    %37 = arith.addf %35, %36 : vector<16x96xf32>
    %38 = vector.shape_cast %37 : vector<16x96xf32> to vector<2x8x96xf32>
    %39 = vector.extract_strided_slice %38 {offsets = [0, 0, 0], sizes = [2, 8, 24], strides = [1, 1, 1]} : vector<2x8x96xf32> to vector<2x8x24xf32>
    %40 = vector.extract_strided_slice %38 {offsets = [0, 0, 24], sizes = [2, 8, 24], strides = [1, 1, 1]} : vector<2x8x96xf32> to vector<2x8x24xf32>
    %41 = vector.extract_strided_slice %38 {offsets = [0, 0, 48], sizes = [2, 8, 24], strides = [1, 1, 1]} : vector<2x8x96xf32> to vector<2x8x24xf32>
    %42 = vector.extract_strided_slice %38 {offsets = [0, 0, 72], sizes = [2, 8, 24], strides = [1, 1, 1]} : vector<2x8x96xf32> to vector<2x8x24xf32>
    %43 = tpu.concatenate %39, %40, %41, %42 in 0 : vector<2x8x24xf32>, vector<2x8x24xf32>, vector<2x8x24xf32>, vector<2x8x24xf32> -> vector<8x8x24xf32>
    %44 = vector.extract_strided_slice %43 {offsets = [0, 0, 0], sizes = [8, 8, 8], strides = [1, 1, 1]} : vector<8x8x24xf32> to vector<8x8x8xf32>
    %45 = vector.extract_strided_slice %43 {offsets = [0, 0, 8], sizes = [8, 8, 8], strides = [1, 1, 1]} : vector<8x8x24xf32> to vector<8x8x8xf32>
    %46 = vector.extract_strided_slice %43 {offsets = [0, 0, 16], sizes = [8, 8, 8], strides = [1, 1, 1]} : vector<8x8x24xf32> to vector<8x8x8xf32>
    "tpu.trace_start"() <{level = 10 : i32, message = "bqd,bkd->bqk"}> : () -> ()
    %cst_11 = arith.constant dense<0.000000e+00> : vector<8x8x8xf32>
    %47 = tpu.matmul %44, %45, %cst_11 {dimension_numbers = #tpu.dot_dimension_numbers<[2], [2], [1], [1], [0, 0, 0, 1, 1, 1], [0], [0]>} : vector<8x8x8xf32>, vector<8x8x8xf32>, vector<8x8x8xf32> -> vector<8x8x8xf32>
    "tpu.trace_stop"() : () -> ()
    %c0_12 = arith.constant 0 : index
    %c0_13 = arith.constant 0 : index
    %c0_14 = arith.constant 0 : index
    %48 = vector.load %arg2[%c0_12, %c0_13, %c0_14] : memref<8x1x8xf32, #tpu.memory_space<vmem>>, vector<8x1x8xf32>
    %49 = vector.broadcast %48 : vector<8x1x8xf32> to vector<8x8x8xf32>
    %50 = arith.addf %47, %49 : vector<8x8x8xf32>
    %cst_15 = arith.constant dense<0xFF800000> : vector<8x8xf32>
    %51 = vector.multi_reduction <maximumf>, %50, %cst_15 [2] : vector<8x8x8xf32> to vector<8x8xf32>
    %52 = vector.shape_cast %51 : vector<8x8xf32> to vector<8x8x1xf32>
    %53 = vector.broadcast %52 : vector<8x8x1xf32> to vector<8x8x8xf32>
    %54 = arith.subf %50, %53 : vector<8x8x8xf32>
    %55 = math.exp %54 : vector<8x8x8xf32>
    %cst_16 = arith.constant dense<0.000000e+00> : vector<8x8xf32>
    %56 = vector.multi_reduction <add>, %55, %cst_16 [2] : vector<8x8x8xf32> to vector<8x8xf32>
    %57 = vector.shape_cast %56 : vector<8x8xf32> to vector<8x8x1xf32>
    %58 = tpu.reciprocal %57 : vector<8x8x1xf32> -> vector<8x8x1xf32>
    %59 = vector.broadcast %58 : vector<8x8x1xf32> to vector<8x8x8xf32>
    %60 = arith.mulf %55, %59 : vector<8x8x8xf32>
    "tpu.trace_start"() <{level = 10 : i32, message = "bqk,bkd->bqd"}> : () -> ()
    %cst_17 = arith.constant dense<0.000000e+00> : vector<8x8x8xf32>
    %61 = tpu.matmul %60, %46, %cst_17 {dimension_numbers = #tpu.dot_dimension_numbers<[2], [1], [1], [2], [0, 0, 0, 1, 1, 2], [0], [0]>} : vector<8x8x8xf32>, vector<8x8x8xf32>, vector<8x8x8xf32> -> vector<8x8x8xf32>
    "tpu.trace_stop"() : () -> ()
    %62 = vector.extract_strided_slice %61 {offsets = [0, 0, 0], sizes = [2, 8, 8], strides = [1, 1, 1]} : vector<8x8x8xf32> to vector<2x8x8xf32>
    %63 = vector.extract_strided_slice %61 {offsets = [2, 0, 0], sizes = [2, 8, 8], strides = [1, 1, 1]} : vector<8x8x8xf32> to vector<2x8x8xf32>
    %64 = vector.extract_strided_slice %61 {offsets = [4, 0, 0], sizes = [2, 8, 8], strides = [1, 1, 1]} : vector<8x8x8xf32> to vector<2x8x8xf32>
    %65 = vector.extract_strided_slice %61 {offsets = [6, 0, 0], sizes = [2, 8, 8], strides = [1, 1, 1]} : vector<8x8x8xf32> to vector<2x8x8xf32>
    %66 = tpu.concatenate %62, %63, %64, %65 in 2 : vector<2x8x8xf32>, vector<2x8x8xf32>, vector<2x8x8xf32>, vector<2x8x8xf32> -> vector<2x8x32xf32>
    %67 = vector.shape_cast %66 : vector<2x8x32xf32> to vector<16x32xf32>
    %c0_18 = arith.constant 0 : index
    %c0_19 = arith.constant 0 : index
    %68 = vector.load %arg5[%c0_18, %c0_19] : memref<32x32xf32, #tpu.memory_space<vmem>>, vector<32x32xf32>
    %cst_20 = arith.constant dense<0.000000e+00> : vector<16x32xf32>
    %69 = tpu.matmul %67, %68, %cst_20 {dimension_numbers = #tpu.dot_dimension_numbers<[1], [0], [0], [1], [0, 0, 1, 1], [], []>} : vector<16x32xf32>, vector<32x32xf32>, vector<16x32xf32> -> vector<16x32xf32>
    %70 = vector.broadcast %5 : vector<1x32xf32> to vector<16x32xf32>
    %71 = arith.addf %69, %70 : vector<16x32xf32>
    %72 = arith.addf %10, %71 : vector<16x32xf32>
    %73 = vector.extract_strided_slice %72 {offsets = [0, 0], sizes = [8, 32], strides = [1, 1]} : vector<16x32xf32> to vector<8x32xf32>
    %cst_21 = arith.constant dense<0.000000e+00> : vector<8xf32>
    %74 = vector.multi_reduction <add>, %73, %cst_21 [1] : vector<8x32xf32> to vector<8xf32>
    %75 = vector.shape_cast %74 : vector<8xf32> to vector<8x1xf32>
    %cst_22 = arith.constant 3.200000e+01 : f32
    %76 = vector.broadcast %cst_22 : f32 to vector<8x1xf32>
    %77 = arith.divf %75, %76 : vector<8x1xf32>
    %78 = vector.broadcast %77 : vector<8x1xf32> to vector<8x32xf32>
    %79 = arith.subf %73, %78 : vector<8x32xf32>
    %80 = arith.mulf %79, %79 : vector<8x32xf32>
    %cst_23 = arith.constant dense<0.000000e+00> : vector<8xf32>
    %81 = vector.multi_reduction <add>, %80, %cst_23 [1] : vector<8x32xf32> to vector<8xf32>
    %82 = vector.shape_cast %81 : vector<8xf32> to vector<8x1xf32>
    %cst_24 = arith.constant 0.0322580636 : f32
    %83 = vector.broadcast %cst_24 : f32 to vector<8x1xf32>
    %84 = arith.mulf %82, %83 : vector<8x1xf32>
    %85 = math.sqrt %84 : vector<8x1xf32>
    %86 = vector.broadcast %77 : vector<8x1xf32> to vector<8x32xf32>
    %87 = arith.subf %73, %86 : vector<8x32xf32>
    %88 = vector.broadcast %6 : vector<1x32xf32> to vector<8x32xf32>
    %89 = arith.mulf %88, %87 : vector<8x32xf32>
    %cst_25 = arith.constant 9.99999997E-7 : f32
    %90 = vector.broadcast %cst_25 : f32 to vector<8x1xf32>
    %91 = arith.addf %85, %90 : vector<8x1xf32>
    %92 = tpu.reciprocal %91 : vector<8x1xf32> -> vector<8x1xf32>
    %93 = vector.broadcast %92 : vector<8x1xf32> to vector<8x32xf32>
    %94 = arith.mulf %89, %93 : vector<8x32xf32>
    %95 = vector.broadcast %7 : vector<1x32xf32> to vector<8x32xf32>
    %96 = arith.addf %94, %95 : vector<8x32xf32>
    %c0_26 = arith.constant 0 : index
    %c0_27 = arith.constant 0 : index
    %97 = vector.load %arg6[%c0_26, %c0_27] : memref<32x64xf32, #tpu.memory_space<vmem>>, vector<32x64xf32>
    %cst_28 = arith.constant dense<0.000000e+00> : vector<8x64xf32>
    %98 = tpu.matmul %96, %97, %cst_28 {dimension_numbers = #tpu.dot_dimension_numbers<[1], [0], [0], [1], [0, 0, 1, 1], [], []>} : vector<8x32xf32>, vector<32x64xf32>, vector<8x64xf32> -> vector<8x64xf32>
    %99 = vector.broadcast %8 : vector<1x64xf32> to vector<8x64xf32>
    %100 = arith.addf %98, %99 : vector<8x64xf32>
    %cst_29 = arith.constant 5.000000e-01 : f32
    %101 = vector.broadcast %cst_29 : f32 to vector<8x64xf32>
    %102 = arith.mulf %101, %100 : vector<8x64xf32>
    %103 = arith.mulf %100, %100 : vector<8x64xf32>
    %104 = arith.mulf %100, %103 : vector<8x64xf32>
    %cst_30 = arith.constant 4.471500e-02 : f32
    %105 = vector.broadcast %cst_30 : f32 to vector<8x64xf32>
    %106 = arith.mulf %105, %104 : vector<8x64xf32>
    %107 = arith.addf %100, %106 : vector<8x64xf32>
    %cst_31 = arith.constant 0.797884583 : f32
    %108 = vector.broadcast %cst_31 : f32 to vector<8x64xf32>
    %109 = arith.mulf %108, %107 : vector<8x64xf32>
    %110 = math.tanh %109 : vector<8x64xf32>
    %cst_32 = arith.constant 1.000000e+00 : f32
    %111 = vector.broadcast %cst_32 : f32 to vector<8x64xf32>
    %112 = arith.addf %111, %110 : vector<8x64xf32>
    %113 = arith.mulf %102, %112 : vector<8x64xf32>
    %c0_33 = arith.constant 0 : index
    %c0_34 = arith.constant 0 : index
    %114 = vector.load %arg7[%c0_33, %c0_34] : memref<64x32xf32, #tpu.memory_space<vmem>>, vector<64x32xf32>
    %cst_35 = arith.constant dense<0.000000e+00> : vector<8x32xf32>
    %115 = tpu.matmul %113, %114, %cst_35 {dimension_numbers = #tpu.dot_dimension_numbers<[1], [0], [0], [1], [0, 0, 1, 1], [], []>} : vector<8x64xf32>, vector<64x32xf32>, vector<8x32xf32> -> vector<8x32xf32>
    %116 = vector.broadcast %9 : vector<1x32xf32> to vector<8x32xf32>
    %117 = arith.addf %115, %116 : vector<8x32xf32>
    %118 = vector.shape_cast %72 : vector<16x32xf32> to vector<2x8x32xf32>
    %119 = vector.shape_cast %117 : vector<8x32xf32> to vector<1x8x32xf32>
    %120 = vector.broadcast %119 : vector<1x8x32xf32> to vector<2x8x32xf32>
    %121 = arith.addf %118, %120 : vector<2x8x32xf32>
    %c0_36 = arith.constant 0 : index
    %c0_37 = arith.constant 0 : index
    %c0_38 = arith.constant 0 : index
    %122 = vector.load %arg8[%c0_36, %c0_37, %c0_38] : memref<2x8x32xf32, #tpu.memory_space<vmem>>, vector<2x8x32xf32>
    tpu.vector_store %arg8[%c0_36, %c0_37, %c0_38], %121 {strides = array<i32>} : memref<2x8x32xf32, #tpu.memory_space<vmem>>, vector<2x8x32xf32>,
    return
  }
  func.func @transform_0(%arg0: i32) -> (i32, i32, i32) {
    %c0_i32 = arith.constant 0 : i32
    %c0_i32_0 = arith.constant 0 : i32
    %c0_i32_1 = arith.constant 0 : i32
    %c0_i32_2 = arith.constant 0 : i32
    return %c0_i32, %c0_i32_0, %c0_i32_1 : i32, i32, i32
  }
  func.func @transform_1(%arg0: i32) -> (i32, i32, i32) {
    %c0_i32 = arith.constant 0 : i32
    %c0_i32_0 = arith.constant 0 : i32
    %c0_i32_1 = arith.constant 0 : i32
    %c0_i32_2 = arith.constant 0 : i32
    return %c0_i32, %c0_i32_0, %c0_i32_1 : i32, i32, i32
  }
  func.func @transform_2(%arg0: i32) -> (i32, i32) {
    %c0_i32 = arith.constant 0 : i32
    %c0_i32_0 = arith.constant 0 : i32
    %c0_i32_1 = arith.constant 0 : i32
    return %c0_i32, %c0_i32_0 : i32, i32
  }
  func.func @transform_3(%arg0: i32) -> (i32, i32) {
    %c0_i32 = arith.constant 0 : i32
    %c0_i32_0 = arith.constant 0 : i32
    %c0_i32_1 = arith.constant 0 : i32
    return %c0_i32, %c0_i32_0 : i32, i32
  }
  func.func @transform_4(%arg0: i32) -> (i32, i32) {
    %c0_i32 = arith.constant 0 : i32
    %c0_i32_0 = arith.constant 0 : i32
    %c0_i32_1 = arith.constant 0 : i32
    return %c0_i32, %c0_i32_0 : i32, i32
  }
  func.func @transform_5(%arg0: i32) -> (i32, i32) {
    %c0_i32 = arith.constant 0 : i32
    %c0_i32_0 = arith.constant 0 : i32
    %c0_i32_1 = arith.constant 0 : i32
    return %c0_i32, %c0_i32_0 : i32, i32
  }
  func.func @transform_6(%arg0: i32) -> (i32, i32) {
    %c0_i32 = arith.constant 0 : i32
    %c0_i32_0 = arith.constant 0 : i32
    %c0_i32_1 = arith.constant 0 : i32
    return %c0_i32, %c0_i32_0 : i32, i32
  }
  func.func @transform_7(%arg0: i32) -> (i32, i32, i32) {
    %c0_i32 = arith.constant 0 : i32
    %c0_i32_0 = arith.constant 0 : i32
    %c0_i32_1 = arith.constant 0 : i32
    %c0_i32_2 = arith.constant 0 : i32
    return %c0_i32, %c0_i32_0, %c0_i32_1 : i32, i32, i32
  }
}

</mosaic_0001>

<llo_original>
// kernel: tpu_custom_call.1
$region0: #{tpu_custom_call.1}
  #allocation0 [shape = 'u32[]', space=smem, size = 0x4, offset = 0x4, fixed_abs, tag = 'smem constant byte address 0x4 - core index']
  #allocation1 [shape = 'u32[144,128]{1,0:T(1,128)}', space=vmem, size = 0x12000, scoped, tag = 'internal scratch']
  %s0 = inlined_call_operand.hbm [shape: f32[2,8,32], index: 0, kind: input, shape index: {}]
  %s1 = inlined_call_operand.hbm [shape: f32[8,1,8], index: 1, kind: input, shape index: {}]
  %s2 = inlined_call_operand.hbm [shape: f32[8,128], index: 2, kind: input, shape index: {}]
  %s3 = inlined_call_operand.vmem [shape: f32[32,96], index: 3, kind: input, shape index: {}]
  %s4 = inlined_call_operand.vmem [shape: f32[32,32], index: 4, kind: input, shape index: {}]
  %s5 = inlined_call_operand.vmem [shape: f32[32,64], index: 5, kind: input, shape index: {}]
  %s6 = inlined_call_operand.vmem [shape: f32[64,32], index: 6, kind: input, shape index: {}]
  %s7 = inlined_call_operand.hbm [shape: f32[2,8,32], index: 7, kind: output, shape index: {}]
  %s8 = sld [smem:[#allocation0]]
  $region50: #{tpu_custom_call.1} parent=0
    _
  %s10 = ssub.s32 1, %s8
  %s11 = scalar_select 0, %s10, %s8
  $region1: #{tpu_custom_call.1} parent=0
    #allocation2 [shape = 'u8[8192]{0}', space=vmem, size = 0x2000, scoped, tag = 'input window, operand 0, single buffered']
    #allocation3 [shape = 's32[1]{0}', space=sflag, size = 0x4, scoped, tag = 'scoped memory for tpu_custom_call.1']
    #allocation4 [shape = 's32[1]{0}', space=sflag, size = 0x4, scoped, tag = 'scoped memory for tpu_custom_call.1']
    #allocation5 [shape = 'u8[4096]{0}', space=vmem, size = 0x1000, scoped, tag = 'input window, operand 1, single buffered']
    #allocation6 [shape = 's32[1]{0}', space=sflag, size = 0x4, scoped, tag = 'scoped memory for tpu_custom_call.1']
    #allocation7 [shape = 'u8[4096]{0}', space=vmem, size = 0x1000, scoped, tag = 'input window, operand 2, single buffered']
    #allocation8 [shape = 'u8[8192]{0}', space=vmem, size = 0x2000, scoped, tag = 'output window, operand 0, single buffered']
    %12 = vsyncpa [#allocation3], 0
    %13 = vsyncpa [#allocation6], 0
    %14 = vsyncpa [#allocation4], 0
    // Predicated region
    $region2: #{tpu_custom_call.1} parent=1 // pred_check
      _
    $region3: #{tpu_custom_call.1} parent=1 // pred_check_branch
      %16 = sbr.rel (0) target = $region5
    $region4: #{tpu_custom_call.1} parent=1 // pred_region
      %s18 = ssub.s32 256, 256
      %19 = vsyncadd [#allocation3], %s18
      %s20 = sshll.u32 [#allocation2], 4
      %s21 = int_to_ptr.vmem [resolvable:$true] %s20
      %26 = dma.hbm_to_vmem [thread:$0]  %s0, 256, %s21, [#allocation3], 128, 128, 8
    $region5: #{tpu_custom_call.1} parent=1 // pred_fallthru
      _
    // Predicated region
    $region6: #{tpu_custom_call.1} parent=1 // pred_check
      _
    $region7: #{tpu_custom_call.1} parent=1 // pred_check_branch
      %28 = sbr.rel (0) target = $region9
    $region8: #{tpu_custom_call.1} parent=1 // pred_region
      %s30 = ssub.s32 128, 128
      %31 = vsyncadd [#allocation6], %s30
      %s32 = sshll.u32 [#allocation5], 4
      %s33 = int_to_ptr.vmem [resolvable:$true] %s32
      %38 = dma.hbm_to_vmem [thread:$0]  %s1, 128, %s33, [#allocation6], 16, 16, 1
    $region9: #{tpu_custom_call.1} parent=1 // pred_fallthru
      _
    // Predicated region
    $region10: #{tpu_custom_call.1} parent=1 // pred_check
      _
    $region11: #{tpu_custom_call.1} parent=1 // pred_check_branch
      %40 = sbr.rel (0) target = $region13
    $region12: #{tpu_custom_call.1} parent=1 // pred_region
      %s42 = ssub.s32 128, 128
      %43 = vsyncadd [#allocation6], %s42
      %s45 = sshll.u32 [#allocation7], 4
      %s46 = int_to_ptr.vmem [resolvable:$true] %s45
      %48 = dma.hbm_to_vmem [thread:$0]  %s2, 128, %s46, [#allocation6]
    $region13: #{tpu_custom_call.1} parent=1 // pred_fallthru
      _
    // Predicated region
    $region14: #{tpu_custom_call.1} parent=1 // pred_check
      _
    $region15: #{tpu_custom_call.1} parent=1 // pred_check_branch
      %50 = sbr.rel (0) target = $region17
    $region16: #{tpu_custom_call.1} parent=1 // pred_region
      _
    $region17: #{tpu_custom_call.1} parent=1 // pred_fallthru
      _
    // Predicated region
    $region18: #{tpu_custom_call.1} parent=1 // pred_check
      _
    $region19: #{tpu_custom_call.1} parent=1 // pred_check_branch
      %52 = sbr.rel (0) target = $region21
    $region20: #{tpu_custom_call.1} parent=1 // pred_region
      _
    $region21: #{tpu_custom_call.1} parent=1 // pred_fallthru
      _
    // Predicated region
    $region22: #{tpu_custom_call.1} parent=1 // pred_check
      _
    $region23: #{tpu_custom_call.1} parent=1 // pred_check_branch
      %54 = sbr.rel (0) target = $region25
    $region24: #{tpu_custom_call.1} parent=1 // pred_region
      _
    $region25: #{tpu_custom_call.1} parent=1 // pred_fallthru
      _
    // Predicated region
    $region26: #{tpu_custom_call.1} parent=1 // pred_check
      _
    $region27: #{tpu_custom_call.1} parent=1 // pred_check_branch
      %56 = sbr.rel (0) target = $region29
    $region28: #{tpu_custom_call.1} parent=1 // pred_region
      _
    $region29: #{tpu_custom_call.1} parent=1 // pred_fallthru
      _
    // Predicated region
    $region30: #{tpu_custom_call.1} parent=1 // pred_check
      _
    $region31: #{tpu_custom_call.1} parent=1 // pred_check_branch
      %58 = sbr.rel (0) target = $region33
    $region32: #{tpu_custom_call.1} parent=1 // pred_region
      %59 = dma.done [#allocation3], 256
    $region33: #{tpu_custom_call.1} parent=1 // pred_fallthru
      _
    // Predicated region
    $region34: #{tpu_custom_call.1} parent=1 // pred_check
      _
    $region35: #{tpu_custom_call.1} parent=1 // pred_check_branch
      %61 = sbr.rel (0) target = $region37
    $region36: #{tpu_custom_call.1} parent=1 // pred_region
      %62 = dma.done [#allocation6], 128
    $region37: #{tpu_custom_call.1} parent=1 // pred_fallthru
      _
    // Predicated region
    $region38: #{tpu_custom_call.1} parent=1 // pred_check
      _
    $region39: #{tpu_custom_call.1} parent=1 // pred_check_branch
      %64 = sbr.rel (0) target = $region41
    $region40: #{tpu_custom_call.1} parent=1 // pred_region
      %65 = dma.done [#allocation6], 128
    $region41: #{tpu_custom_call.1} parent=1 // pred_fallthru
      _
    %v66 = vld [vmem:[#allocation2] sm:$0xff]
    %v67 = vld [vmem:[#allocation2 + $0x8] sm:$0xff]
    %v68 = vld [vmem:[#allocation7] sm:$0xff]
    %vm69 = vcmask 261120
    %v70 = vsel %vm69, %v66, 0.0
    %71 = vadd.xlane.f32.xlu0 %v70
    %v72 = vpop.xlane.xlu0 %71
    %v73 = vsel %vm69, %v67, 0.0
    %74 = vadd.xlane.f32.xlu0 %v73
    %v75 = vpop.xlane.xlu0 %74
    %v76 = vrcp.pop 32.0
    %v77 = vmul.f32 %v72, %v76
    %v78 = vmul.f32 %v75, %v76
    %v79 = vsub.f32 %v66, %v77
    %v80 = vsub.f32 %v67, %v78
    %v81 = vmul.f32 %v79, %v79
    %v82 = vmul.f32 %v80, %v80
    %v83 = vsel %vm69, %v81, 0.0
    %84 = vadd.xlane.f32.xlu0 %v83
    %v85 = vpop.xlane.xlu0 %84
    %v86 = vsel %vm69, %v82, 0.0
    %87 = vadd.xlane.f32.xlu0 %v86
    %v88 = vpop.xlane.xlu0 %87
    %v89 = vmul.f32 %v85, 0.032258064
    %v90 = vmul.f32 %v88, 0.032258064
    %v91 = vrsqrt.pop %v89
    %v92 = vmul.f32 %v89, %v91
    %vm93 = vcmp.eq.f32.partialorder %v89, inf
    %v94 = vsel %vm93, %v89, %v92
    %vm95 = vcmp.eq.f32.partialorder %v89, 0.0
    %v96 = vand.u32 %v89, 2147483648
    %v97 = vsel %vm95, %v96, %v94
    %v98 = vrsqrt.pop %v90
    %v99 = vmul.f32 %v90, %v98
    %vm100 = vcmp.eq.f32.partialorder %v90, inf
    %v101 = vsel %vm100, %v90, %v99
    %vm102 = vcmp.eq.f32.partialorder %v90, 0.0
    %v103 = vand.u32 %v90, 2147483648
    %v104 = vsel %vm102, %v103, %v101
    %v105 = vlaneseq
    %v106 = vshrl.u32 %v105, 7
    %v107 = vsub.s32 0, %v106
    %v108 = vrot.slane %v68, %v107
    %v109 = vmul.f32 %v108, %v79
    %v110 = vmul.f32 %v108, %v80
    %v111 = vadd.f32 %v97, 1e-06
    %v112 = vadd.f32 %v104, 1e-06
    %v113 = vrcp.pop %v111
    %v114 = vrcp.pop %v112
    %v115 = vmul.f32 %v109, %v113
    %v116 = vmul.f32 %v110, %v114
    %v117 = vlaneseq
    %v118 = vshrl.u32 %v117, 7
    %v119 = vsub.s32 1, %v118
    %v120 = vrot.slane %v68, %v119
    %v121 = vadd.f32 %v115, %v120
    %v122 = vadd.f32 %v116, %v120
    %v123 = vld [vmem:[%s3] sm:$0xff]
    %v124 = vld [vmem:[%s3 + $0x8] sm:$0xff]
    %v125 = vld [vmem:[%s3 + $0x10] sm:$0xff]
    %v126 = vld [vmem:[%s3 + $0x18] sm:$0xff]
    %v127 = vlaneseq
    %v128 = vshrl.u32 %v127, 7
    %v129 = vsub.s32 2, %v128
    %v130 = vrot.slane %v68, %v129
    %v132 = vsel %vm69, %v121, 0
    %v135 = vsel %vm69, %v122, 0
    %137 = vmatprep.subr.mxu0 0.0
    %138 = vmatpush1.msra.mxu0 0.0
    %139 = vmatprep.subr.mxu0 0.0
    %140 = vmatpush1.msra.mxu0 0.0
    %141 = vmatprep.subr.mxu0 0.0
    %142 = vmatpush1.msra.mxu0 0.0
    %143 = vmatprep.subr.mxu0 0.0
    %144 = vmatpush1.msra.mxu0 0.0
    %145 = vmatprep.subr.mxu0 0.0
    %146 = vmatpush1.msra.mxu0 0.0
    %147 = vmatprep.subr.mxu0 0.0
    %148 = vmatpush1.msra.mxu0 0.0
    %149 = vmatprep.subr.mxu0 0.0
    %150 = vmatpush1.msra.mxu0 0.0
    %151 = vmatprep.subr.mxu0 0.0
    %152 = vmatpush1.msra.mxu0 0.0
    %153 = vmatprep.subr.mxu0 0.0
    %154 = vmatpush1.msra.mxu0 0.0
    %155 = vmatprep.subr.mxu0 0.0
    %156 = vmatpush1.msra.mxu0 0.0
    %157 = vmatprep.subr.mxu0 0.0
    %158 = vmatpush1.msra.mxu0 0.0
    %159 = vmatprep.subr.mxu0 0.0
    %160 = vmatpush1.msra.mxu0 0.0
    %161 = vmatprep.subr.mxu0 0.0
    %162 = vmatpush1.msra.mxu0 %v126
    %163 = vmatprep.subr.mxu0 0.0
    %164 = vmatpush1.msra.mxu0 %v125
    %165 = vmatprep.subr.mxu0 0.0
    %166 = vmatpush1.msra.mxu0 %v124
    %167 = vmatprep.subr.mxu0 0.0
    %168 = vmatpush1.msra.mxu0 %v123
    %169 = vmatprep.subr.mxu0 0.0
    %170 = vmatpush2.msra.mxu0 0.0
    %171 = vmatprep.subr.mxu0 0.0
    %172 = vmatpush2.msra.mxu0 0.0
    %173 = vmatprep.subr.mxu0 0.0
    %174 = vmatpush2.msra.mxu0 0.0
    %175 = vmatprep.subr.mxu0 0.0
    %176 = vmatpush2.msra.mxu0 0.0
    %177 = vmatprep.subr.mxu0 0.0
    %178 = vmatpush2.msra.mxu0 0.0
    %179 = vmatprep.subr.mxu0 0.0
    %180 = vmatpush2.msra.mxu0 0.0
    %181 = vmatprep.subr.mxu0 0.0
    %182 = vmatpush2.msra.mxu0 0.0
    %183 = vmatprep.subr.mxu0 0.0
    %184 = vmatpush2.msra.mxu0 0.0
    %185 = vmatprep.subr.mxu0 0.0
    %186 = vmatpush2.msra.mxu0 0.0
    %187 = vmatprep.subr.mxu0 0.0
    %188 = vmatpush2.msra.mxu0 0.0
    %189 = vmatprep.subr.mxu0 0.0
    %190 = vmatpush2.msra.mxu0 0.0
    %191 = vmatprep.subr.mxu0 0.0
    %192 = vmatpush2.msra.mxu0 0.0
    %193 = vmatprep.subr.mxu0 0.0
    %194 = vmatpush2.msra.mxu0 0.0
    %195 = vmatprep.subr.mxu0 0.0
    %196 = vmatpush2.msra.mxu0 0.0
    %197 = vmatprep.subr.mxu0 0.0
    %198 = vmatpush2.msra.mxu0 0.0
    %199 = vmatprep.subr.mxu0 0.0
    %200 = vmatpush2.msra.mxu0 0.0
    %201 = vmatprep.mubr.f32.mxu0 0.0
    %202 = vmatmul.mubr.f32.gmra.mxu0 %v132
    %v203 = vpop.f32.mrf.mxu0
    %v204 = vadd.f32 %v130, %v203
    %v205 = vpop.f32.mrf.mxu0
    %206 = vmatprep.mubr.f32.mxu0 0.0
    %207 = vmatmul.mubr.f32.gmra.mxu0 %v135
    %v208 = vpop.f32.mrf.mxu0
    %v209 = vadd.f32 %v130, %v208
    %v210 = vpop.f32.mrf.mxu0
    %211 = vdwg.mxu0
    %214 = vrot.lane.b32.xlu0 %v204, 104
    %v215 = vpop.permute.xlu0 %214
    %216 = vrot.lane.b32.xlu0 %v209, 104
    %v217 = vpop.permute.xlu0 %216
    %218 = vrot.lane.b32.xlu0 %v204, 80
    %v219 = vpop.permute.xlu0 %218
    %220 = vrot.lane.b32.xlu0 %v209, 80
    %v221 = vpop.permute.xlu0 %220
    %222 = vrot.lane.b32.xlu0 %v204, 56
    %v223 = vpop.permute.xlu0 %222
    %224 = vrot.lane.b32.xlu0 %v209, 56
    %v225 = vpop.permute.xlu0 %224
    %v226 = vld [vmem:[#allocation5] sm:$0x1]
    %v227 = vld [vmem:[#allocation5 + $0x1] sm:$0x1]
    %v228 = vld [vmem:[#allocation5 + $0x2] sm:$0x1]
    %v229 = vld [vmem:[#allocation5 + $0x3] sm:$0x1]
    %v230 = vld [vmem:[#allocation5 + $0x4] sm:$0x1]
    %v231 = vld [vmem:[#allocation5 + $0x5] sm:$0x1]
    %v232 = vld [vmem:[#allocation5 + $0x6] sm:$0x1]
    %v233 = vld [vmem:[#allocation5 + $0x7] sm:$0x1]
    %v242 = vlaneseq
    %v243 = vshrl.u32 %v242, 7
    %v244 = vsub.s32 0, %v243
    %v245 = vrot.slane %v226, %v244
    %v246 = vlaneseq
    %v247 = vshrl.u32 %v246, 7
    %v248 = vsub.s32 0, %v247
    %v249 = vrot.slane %v227, %v248
    %v250 = vlaneseq
    %v251 = vshrl.u32 %v250, 7
    %v252 = vsub.s32 0, %v251
    %v253 = vrot.slane %v228, %v252
    %v254 = vlaneseq
    %v255 = vshrl.u32 %v254, 7
    %v256 = vsub.s32 0, %v255
    %v257 = vrot.slane %v229, %v256
    %v258 = vlaneseq
    %v259 = vshrl.u32 %v258, 7
    %v260 = vsub.s32 0, %v259
    %v261 = vrot.slane %v230, %v260
    %v262 = vlaneseq
    %v263 = vshrl.u32 %v262, 7
    %v264 = vsub.s32 0, %v263
    %v265 = vrot.slane %v231, %v264
    %v266 = vlaneseq
    %v267 = vshrl.u32 %v266, 7
    %v268 = vsub.s32 0, %v267
    %v269 = vrot.slane %v232, %v268
    %v270 = vlaneseq
    %v271 = vshrl.u32 %v270, 7
    %v272 = vsub.s32 0, %v271
    %v273 = vrot.slane %v233, %v272
    %282 = vrot.lane.b32.xlu0 %v204, 120
    %v283 = vpop.permute.xlu0 %282
    %vm284 = vcmask 64512
    %v285 = vsel %vm284, %v204, 0
    %v287 = vsel %vm284, %v283, 0
    %289 = vmatprep.subr.mxu0 0.0
    %290 = vmatpush1.xpose.msra.mxu0 0.0
    %291 = vmatprep.subr.mxu0 0.0
    %292 = vmatpush1.xpose.msra.mxu0 0.0
    %293 = vmatprep.subr.mxu0 0.0
    %294 = vmatpush1.xpose.msra.mxu0 0.0
    %295 = vmatprep.subr.mxu0 0.0
    %296 = vmatpush1.xpose.msra.mxu0 0.0
    %297 = vmatprep.subr.mxu0 0.0
    %298 = vmatpush1.xpose.msra.mxu0 0.0
    %299 = vmatprep.subr.mxu0 0.0
    %300 = vmatpush1.xpose.msra.mxu0 0.0
    %301 = vmatprep.subr.mxu0 0.0
    %302 = vmatpush1.xpose.msra.mxu0 0.0
    %303 = vmatprep.subr.mxu0 0.0
    %304 = vmatpush1.xpose.msra.mxu0 0.0
    %305 = vmatprep.subr.mxu0 0.0
    %306 = vmatpush1.xpose.msra.mxu0 0.0
    %307 = vmatprep.subr.mxu0 0.0
    %308 = vmatpush1.xpose.msra.mxu0 0.0
    %309 = vmatprep.subr.mxu0 0.0
    %310 = vmatpush1.xpose.msra.mxu0 0.0
    %311 = vmatprep.subr.mxu0 0.0
    %312 = vmatpush1.xpose.msra.mxu0 0.0
    %313 = vmatprep.subr.mxu0 0.0
    %314 = vmatpush1.xpose.msra.mxu0 0.0
    %315 = vmatprep.subr.mxu0 0.0
    %316 = vmatpush1.xpose.msra.mxu0 0.0
    %317 = vmatprep.subr.mxu0 0.0
    %318 = vmatpush1.xpose.msra.mxu0 0.0
    %319 = vmatprep.subr.mxu0 0.0
    %320 = vmatpush1.xpose.msra.mxu0 %v287
    %321 = vmatprep.subr.mxu0 0.0
    %322 = vmatpush2.xpose.msra.mxu0 0.0
    %323 = vmatprep.subr.mxu0 0.0
    %324 = vmatpush2.xpose.msra.mxu0 0.0
    %325 = vmatprep.subr.mxu0 0.0
    %326 = vmatpush2.xpose.msra.mxu0 0.0
    %327 = vmatprep.subr.mxu0 0.0
    %328 = vmatpush2.xpose.msra.mxu0 0.0
    %329 = vmatprep.subr.mxu0 0.0
    %330 = vmatpush2.xpose.msra.mxu0 0.0
    %331 = vmatprep.subr.mxu0 0.0
    %332 = vmatpush2.xpose.msra.mxu0 0.0
    %333 = vmatprep.subr.mxu0 0.0
    %334 = vmatpush2.xpose.msra.mxu0 0.0
    %335 = vmatprep.subr.mxu0 0.0
    %336 = vmatpush2.xpose.msra.mxu0 0.0
    %337 = vmatprep.subr.mxu0 0.0
    %338 = vmatpush2.xpose.msra.mxu0 0.0
    %339 = vmatprep.subr.mxu0 0.0
    %340 = vmatpush2.xpose.msra.mxu0 0.0
    %341 = vmatprep.subr.mxu0 0.0
    %342 = vmatpush2.xpose.msra.mxu0 0.0
    %343 = vmatprep.subr.mxu0 0.0
    %344 = vmatpush2.xpose.msra.mxu0 0.0
    %345 = vmatprep.subr.mxu0 0.0
    %346 = vmatpush2.xpose.msra.mxu0 0.0
    %347 = vmatprep.subr.mxu0 0.0
    %348 = vmatpush2.xpose.msra.mxu0 0.0
    %349 = vmatprep.subr.mxu0 0.0
    %350 = vmatpush2.xpose.msra.mxu0 0.0
    %351 = vmatprep.subr.mxu0 0.0
    %352 = vmatpush2.xpose.msra.mxu0 0.0
    %353 = vmatprep.mubr.f32.mxu0 0.0
    %354 = vmatmul.mubr.f32.gmra.mxu0 %v285
    %v355 = vpop.f32.mrf.mxu0
    %v356 = vadd.f32 %v245, %v355
    %v357 = vpop.f32.mrf.mxu0
    %358 = vdwg.mxu0
    %359 = vrot.lane.b32.xlu0 %v209, 120
    %v360 = vpop.permute.xlu0 %359
    %v361 = vsel %vm284, %v209, 0
    %v363 = vsel %vm284, %v360, 0
    %365 = vmatprep.subr.mxu0 0.0
    %366 = vmatpush1.xpose.msra.mxu0 0.0
    %367 = vmatprep.subr.mxu0 0.0
    %368 = vmatpush1.xpose.msra.mxu0 0.0
    %369 = vmatprep.subr.mxu0 0.0
    %370 = vmatpush1.xpose.msra.mxu0 0.0
    %371 = vmatprep.subr.mxu0 0.0
    %372 = vmatpush1.xpose.msra.mxu0 0.0
    %373 = vmatprep.subr.mxu0 0.0
    %374 = vmatpush1.xpose.msra.mxu0 0.0
    %375 = vmatprep.subr.mxu0 0.0
    %376 = vmatpush1.xpose.msra.mxu0 0.0
    %377 = vmatprep.subr.mxu0 0.0
    %378 = vmatpush1.xpose.msra.mxu0 0.0
    %379 = vmatprep.subr.mxu0 0.0
    %380 = vmatpush1.xpose.msra.mxu0 0.0
    %381 = vmatprep.subr.mxu0 0.0
    %382 = vmatpush1.xpose.msra.mxu0 0.0
    %383 = vmatprep.subr.mxu0 0.0
    %384 = vmatpush1.xpose.msra.mxu0 0.0
    %385 = vmatprep.subr.mxu0 0.0
    %386 = vmatpush1.xpose.msra.mxu0 0.0
    %387 = vmatprep.subr.mxu0 0.0
    %388 = vmatpush1.xpose.msra.mxu0 0.0
    %389 = vmatprep.subr.mxu0 0.0
    %390 = vmatpush1.xpose.msra.mxu0 0.0
    %391 = vmatprep.subr.mxu0 0.0
    %392 = vmatpush1.xpose.msra.mxu0 0.0
    %393 = vmatprep.subr.mxu0 0.0
    %394 = vmatpush1.xpose.msra.mxu0 0.0
    %395 = vmatprep.subr.mxu0 0.0
    %396 = vmatpush1.xpose.msra.mxu0 %v363
    %397 = vmatprep.subr.mxu0 0.0
    %398 = vmatpush2.xpose.msra.mxu0 0.0
    %399 = vmatprep.subr.mxu0 0.0
    %400 = vmatpush2.xpose.msra.mxu0 0.0
    %401 = vmatprep.subr.mxu0 0.0
    %402 = vmatpush2.xpose.msra.mxu0 0.0
    %403 = vmatprep.subr.mxu0 0.0
    %404 = vmatpush2.xpose.msra.mxu0 0.0
    %405 = vmatprep.subr.mxu0 0.0
    %406 = vmatpush2.xpose.msra.mxu0 0.0
    %407 = vmatprep.subr.mxu0 0.0
    %408 = vmatpush2.xpose.msra.mxu0 0.0
    %409 = vmatprep.subr.mxu0 0.0
    %410 = vmatpush2.xpose.msra.mxu0 0.0
    %411 = vmatprep.subr.mxu0 0.0
    %412 = vmatpush2.xpose.msra.mxu0 0.0
    %413 = vmatprep.subr.mxu0 0.0
    %414 = vmatpush2.xpose.msra.mxu0 0.0
    %415 = vmatprep.subr.mxu0 0.0
    %416 = vmatpush2.xpose.msra.mxu0 0.0
    %417 = vmatprep.subr.mxu0 0.0
    %418 = vmatpush2.xpose.msra.mxu0 0.0
    %419 = vmatprep.subr.mxu0 0.0
    %420 = vmatpush2.xpose.msra.mxu0 0.0
    %421 = vmatprep.subr.mxu0 0.0
    %422 = vmatpush2.xpose.msra.mxu0 0.0
    %423 = vmatprep.subr.mxu0 0.0
    %424 = vmatpush2.xpose.msra.mxu0 0.0
    %425 = vmatprep.subr.mxu0 0.0
    %426 = vmatpush2.xpose.msra.mxu0 0.0
    %427 = vmatprep.subr.mxu0 0.0
    %428 = vmatpush2.xpose.msra.mxu0 0.0
    %429 = vmatprep.mubr.f32.mxu0 0.0
    %430 = vmatmul.mubr.f32.gmra.mxu0 %v361
    %v431 = vpop.f32.mrf.mxu0
    %v432 = vadd.f32 %v249, %v431
    %v433 = vpop.f32.mrf.mxu0
    %434 = vdwg.mxu0
    %435 = vrot.lane.b32.xlu0 %v215, 120
    %v436 = vpop.permute.xlu0 %435
    %v437 = vsel %vm284, %v215, 0
    %v439 = vsel %vm284, %v436, 0
    %441 = vmatprep.subr.mxu0 0.0
    %442 = vmatpush1.xpose.msra.mxu0 0.0
    %443 = vmatprep.subr.mxu0 0.0
    %444 = vmatpush1.xpose.msra.mxu0 0.0
    %445 = vmatprep.subr.mxu0 0.0
    %446 = vmatpush1.xpose.msra.mxu0 0.0
    %447 = vmatprep.subr.mxu0 0.0
    %448 = vmatpush1.xpose.msra.mxu0 0.0
    %449 = vmatprep.subr.mxu0 0.0
    %450 = vmatpush1.xpose.msra.mxu0 0.0
    %451 = vmatprep.subr.mxu0 0.0
    %452 = vmatpush1.xpose.msra.mxu0 0.0
    %453 = vmatprep.subr.mxu0 0.0
    %454 = vmatpush1.xpose.msra.mxu0 0.0
    %455 = vmatprep.subr.mxu0 0.0
    %456 = vmatpush1.xpose.msra.mxu0 0.0
    %457 = vmatprep.subr.mxu0 0.0
    %458 = vmatpush1.xpose.msra.mxu0 0.0
    %459 = vmatprep.subr.mxu0 0.0
    %460 = vmatpush1.xpose.msra.mxu0 0.0
    %461 = vmatprep.subr.mxu0 0.0
    %462 = vmatpush1.xpose.msra.mxu0 0.0
    %463 = vmatprep.subr.mxu0 0.0
    %464 = vmatpush1.xpose.msra.mxu0 0.0
    %465 = vmatprep.subr.mxu0 0.0
    %466 = vmatpush1.xpose.msra.mxu0 0.0
    %467 = vmatprep.subr.mxu0 0.0
    %468 = vmatpush1.xpose.msra.mxu0 0.0
    %469 = vmatprep.subr.mxu0 0.0
    %470 = vmatpush1.xpose.msra.mxu0 0.0
    %471 = vmatprep.subr.mxu0 0.0
    %472 = vmatpush1.xpose.msra.mxu0 %v439
    %473 = vmatprep.subr.mxu0 0.0
    %474 = vmatpush2.xpose.msra.mxu0 0.0
    %475 = vmatprep.subr.mxu0 0.0
    %476 = vmatpush2.xpose.msra.mxu0 0.0
    %477 = vmatprep.subr.mxu0 0.0
    %478 = vmatpush2.xpose.msra.mxu0 0.0
    %479 = vmatprep.subr.mxu0 0.0
    %480 = vmatpush2.xpose.msra.mxu0 0.0
    %481 = vmatprep.subr.mxu0 0.0
    %482 = vmatpush2.xpose.msra.mxu0 0.0
    %483 = vmatprep.subr.mxu0 0.0
    %484 = vmatpush2.xpose.msra.mxu0 0.0
    %485 = vmatprep.subr.mxu0 0.0
    %486 = vmatpush2.xpose.msra.mxu0 0.0
    %487 = vmatprep.subr.mxu0 0.0
    %488 = vmatpush2.xpose.msra.mxu0 0.0
    %489 = vmatprep.subr.mxu0 0.0
    %490 = vmatpush2.xpose.msra.mxu0 0.0
    %491 = vmatprep.subr.mxu0 0.0
    %492 = vmatpush2.xpose.msra.mxu0 0.0
    %493 = vmatprep.subr.mxu0 0.0
    %494 = vmatpush2.xpose.msra.mxu0 0.0
    %495 = vmatprep.subr.mxu0 0.0
    %496 = vmatpush2.xpose.msra.mxu0 0.0
    %497 = vmatprep.subr.mxu0 0.0
    %498 = vmatpush2.xpose.msra.mxu0 0.0
    %499 = vmatprep.subr.mxu0 0.0
    %500 = vmatpush2.xpose.msra.mxu0 0.0
    %501 = vmatprep.subr.mxu0 0.0
    %502 = vmatpush2.xpose.msra.mxu0 0.0
    %503 = vmatprep.subr.mxu0 0.0
    %504 = vmatpush2.xpose.msra.mxu0 0.0
    %505 = vmatprep.mubr.f32.mxu0 0.0
    %506 = vmatmul.mubr.f32.gmra.mxu0 %v437
    %v507 = vpop.f32.mrf.mxu0
    %v508 = vadd.f32 %v253, %v507
    %v509 = vpop.f32.mrf.mxu0
    %510 = vdwg.mxu0
    %511 = vrot.lane.b32.xlu0 %v217, 120
    %v512 = vpop.permute.xlu0 %511
    %v513 = vsel %vm284, %v217, 0
    %v515 = vsel %vm284, %v512, 0
    %517 = vmatprep.subr.mxu0 0.0
    %518 = vmatpush1.xpose.msra.mxu0 0.0
    %519 = vmatprep.subr.mxu0 0.0
    %520 = vmatpush1.xpose.msra.mxu0 0.0
    %521 = vmatprep.subr.mxu0 0.0
    %522 = vmatpush1.xpose.msra.mxu0 0.0
    %523 = vmatprep.subr.mxu0 0.0
    %524 = vmatpush1.xpose.msra.mxu0 0.0
    %525 = vmatprep.subr.mxu0 0.0
    %526 = vmatpush1.xpose.msra.mxu0 0.0
    %527 = vmatprep.subr.mxu0 0.0
    %528 = vmatpush1.xpose.msra.mxu0 0.0
    %529 = vmatprep.subr.mxu0 0.0
    %530 = vmatpush1.xpose.msra.mxu0 0.0
    %531 = vmatprep.subr.mxu0 0.0
    %532 = vmatpush1.xpose.msra.mxu0 0.0
    %533 = vmatprep.subr.mxu0 0.0
    %534 = vmatpush1.xpose.msra.mxu0 0.0
    %535 = vmatprep.subr.mxu0 0.0
    %536 = vmatpush1.xpose.msra.mxu0 0.0
    %537 = vmatprep.subr.mxu0 0.0
    %538 = vmatpush1.xpose.msra.mxu0 0.0
    %539 = vmatprep.subr.mxu0 0.0
    %540 = vmatpush1.xpose.msra.mxu0 0.0
    %541 = vmatprep.subr.mxu0 0.0
    %542 = vmatpush1.xpose.msra.mxu0 0.0
    %543 = vmatprep.subr.mxu0 0.0
    %544 = vmatpush1.xpose.msra.mxu0 0.0
    %545 = vmatprep.subr.mxu0 0.0
    %546 = vmatpush1.xpose.msra.mxu0 0.0
    %547 = vmatprep.subr.mxu0 0.0
    %548 = vmatpush1.xpose.msra.mxu0 %v515
    %549 = vmatprep.subr.mxu0 0.0
    %550 = vmatpush2.xpose.msra.mxu0 0.0
    %551 = vmatprep.subr.mxu0 0.0
    %552 = vmatpush2.xpose.msra.mxu0 0.0
    %553 = vmatprep.subr.mxu0 0.0
    %554 = vmatpush2.xpose.msra.mxu0 0.0
    %555 = vmatprep.subr.mxu0 0.0
    %556 = vmatpush2.xpose.msra.mxu0 0.0
    %557 = vmatprep.subr.mxu0 0.0
    %558 = vmatpush2.xpose.msra.mxu0 0.0
    %559 = vmatprep.subr.mxu0 0.0
    %560 = vmatpush2.xpose.msra.mxu0 0.0
    %561 = vmatprep.subr.mxu0 0.0
    %562 = vmatpush2.xpose.msra.mxu0 0.0
    %563 = vmatprep.subr.mxu0 0.0
    %564 = vmatpush2.xpose.msra.mxu0 0.0
    %565 = vmatprep.subr.mxu0 0.0
    %566 = vmatpush2.xpose.msra.mxu0 0.0
    %567 = vmatprep.subr.mxu0 0.0
    %568 = vmatpush2.xpose.msra.mxu0 0.0
    %569 = vmatprep.subr.mxu0 0.0
    %570 = vmatpush2.xpose.msra.mxu0 0.0
    %571 = vmatprep.subr.mxu0 0.0
    %572 = vmatpush2.xpose.msra.mxu0 0.0
    %573 = vmatprep.subr.mxu0 0.0
    %574 = vmatpush2.xpose.msra.mxu0 0.0
    %575 = vmatprep.subr.mxu0 0.0
    %576 = vmatpush2.xpose.msra.mxu0 0.0
    %577 = vmatprep.subr.mxu0 0.0
    %578 = vmatpush2.xpose.msra.mxu0 0.0
    %579 = vmatprep.subr.mxu0 0.0
    %580 = vmatpush2.xpose.msra.mxu0 0.0
    %581 = vmatprep.mubr.f32.mxu0 0.0
    %582 = vmatmul.mubr.f32.gmra.mxu0 %v513
    %v583 = vpop.f32.mrf.mxu0
    %v584 = vadd.f32 %v257, %v583
    %v585 = vpop.f32.mrf.mxu0
    %586 = vdwg.mxu0
    %587 = vrot.lane.b32.xlu0 %v219, 120
    %v588 = vpop.permute.xlu0 %587
    %v589 = vsel %vm284, %v219, 0
    %v591 = vsel %vm284, %v588, 0
    %593 = vmatprep.subr.mxu0 0.0
    %594 = vmatpush1.xpose.msra.mxu0 0.0
    %595 = vmatprep.subr.mxu0 0.0
    %596 = vmatpush1.xpose.msra.mxu0 0.0
    %597 = vmatprep.subr.mxu0 0.0
    %598 = vmatpush1.xpose.msra.mxu0 0.0
    %599 = vmatprep.subr.mxu0 0.0
    %600 = vmatpush1.xpose.msra.mxu0 0.0
    %601 = vmatprep.subr.mxu0 0.0
    %602 = vmatpush1.xpose.msra.mxu0 0.0
    %603 = vmatprep.subr.mxu0 0.0
    %604 = vmatpush1.xpose.msra.mxu0 0.0
    %605 = vmatprep.subr.mxu0 0.0
    %606 = vmatpush1.xpose.msra.mxu0 0.0
    %607 = vmatprep.subr.mxu0 0.0
    %608 = vmatpush1.xpose.msra.mxu0 0.0
    %609 = vmatprep.subr.mxu0 0.0
    %610 = vmatpush1.xpose.msra.mxu0 0.0
    %611 = vmatprep.subr.mxu0 0.0
    %612 = vmatpush1.xpose.msra.mxu0 0.0
    %613 = vmatprep.subr.mxu0 0.0
    %614 = vmatpush1.xpose.msra.mxu0 0.0
    %615 = vmatprep.subr.mxu0 0.0
    %616 = vmatpush1.xpose.msra.mxu0 0.0
    %617 = vmatprep.subr.mxu0 0.0
    %618 = vmatpush1.xpose.msra.mxu0 0.0
    %619 = vmatprep.subr.mxu0 0.0
    %620 = vmatpush1.xpose.msra.mxu0 0.0
    %621 = vmatprep.subr.mxu0 0.0
    %622 = vmatpush1.xpose.msra.mxu0 0.0
    %623 = vmatprep.subr.mxu0 0.0
    %624 = vmatpush1.xpose.msra.mxu0 %v591
    %625 = vmatprep.subr.mxu0 0.0
    %626 = vmatpush2.xpose.msra.mxu0 0.0
    %627 = vmatprep.subr.mxu0 0.0
    %628 = vmatpush2.xpose.msra.mxu0 0.0
    %629 = vmatprep.subr.mxu0 0.0
    %630 = vmatpush2.xpose.msra.mxu0 0.0
    %631 = vmatprep.subr.mxu0 0.0
    %632 = vmatpush2.xpose.msra.mxu0 0.0
    %633 = vmatprep.subr.mxu0 0.0
    %634 = vmatpush2.xpose.msra.mxu0 0.0
    %635 = vmatprep.subr.mxu0 0.0
    %636 = vmatpush2.xpose.msra.mxu0 0.0
    %637 = vmatprep.subr.mxu0 0.0
    %638 = vmatpush2.xpose.msra.mxu0 0.0
    %639 = vmatprep.subr.mxu0 0.0
    %640 = vmatpush2.xpose.msra.mxu0 0.0
    %641 = vmatprep.subr.mxu0 0.0
    %642 = vmatpush2.xpose.msra.mxu0 0.0
    %643 = vmatprep.subr.mxu0 0.0
    %644 = vmatpush2.xpose.msra.mxu0 0.0
    %645 = vmatprep.subr.mxu0 0.0
    %646 = vmatpush2.xpose.msra.mxu0 0.0
    %647 = vmatprep.subr.mxu0 0.0
    %648 = vmatpush2.xpose.msra.mxu0 0.0
    %649 = vmatprep.subr.mxu0 0.0
    %650 = vmatpush2.xpose.msra.mxu0 0.0
    %651 = vmatprep.subr.mxu0 0.0
    %652 = vmatpush2.xpose.msra.mxu0 0.0
    %653 = vmatprep.subr.mxu0 0.0
    %654 = vmatpush2.xpose.msra.mxu0 0.0
    %655 = vmatprep.subr.mxu0 0.0
    %656 = vmatpush2.xpose.msra.mxu0 0.0
    %657 = vmatprep.mubr.f32.mxu0 0.0
    %658 = vmatmul.mubr.f32.gmra.mxu0 %v589
    %v659 = vpop.f32.mrf.mxu0
    %v660 = vadd.f32 %v261, %v659
    %v661 = vpop.f32.mrf.mxu0
    %662 = vdwg.mxu0
    %663 = vrot.lane.b32.xlu0 %v221, 120
    %v664 = vpop.permute.xlu0 %663
    %v665 = vsel %vm284, %v221, 0
    %v667 = vsel %vm284, %v664, 0
    %669 = vmatprep.subr.mxu0 0.0
    %670 = vmatpush1.xpose.msra.mxu0 0.0
    %671 = vmatprep.subr.mxu0 0.0
    %672 = vmatpush1.xpose.msra.mxu0 0.0
    %673 = vmatprep.subr.mxu0 0.0
    %674 = vmatpush1.xpose.msra.mxu0 0.0
    %675 = vmatprep.subr.mxu0 0.0
    %676 = vmatpush1.xpose.msra.mxu0 0.0
    %677 = vmatprep.subr.mxu0 0.0
    %678 = vmatpush1.xpose.msra.mxu0 0.0
    %679 = vmatprep.subr.mxu0 0.0
    %680 = vmatpush1.xpose.msra.mxu0 0.0
    %681 = vmatprep.subr.mxu0 0.0
    %682 = vmatpush1.xpose.msra.mxu0 0.0
    %683 = vmatprep.subr.mxu0 0.0
    %684 = vmatpush1.xpose.msra.mxu0 0.0
    %685 = vmatprep.subr.mxu0 0.0
    %686 = vmatpush1.xpose.msra.mxu0 0.0
    %687 = vmatprep.subr.mxu0 0.0
    %688 = vmatpush1.xpose.msra.mxu0 0.0
    %689 = vmatprep.subr.mxu0 0.0
    %690 = vmatpush1.xpose.msra.mxu0 0.0
    %691 = vmatprep.subr.mxu0 0.0
    %692 = vmatpush1.xpose.msra.mxu0 0.0
    %693 = vmatprep.subr.mxu0 0.0
    %694 = vmatpush1.xpose.msra.mxu0 0.0
    %695 = vmatprep.subr.mxu0 0.0
    %696 = vmatpush1.xpose.msra.mxu0 0.0
    %697 = vmatprep.subr.mxu0 0.0
    %698 = vmatpush1.xpose.msra.mxu0 0.0
    %699 = vmatprep.subr.mxu0 0.0
    %700 = vmatpush1.xpose.msra.mxu0 %v667
    %701 = vmatprep.subr.mxu0 0.0
    %702 = vmatpush2.xpose.msra.mxu0 0.0
    %703 = vmatprep.subr.mxu0 0.0
    %704 = vmatpush2.xpose.msra.mxu0 0.0
    %705 = vmatprep.subr.mxu0 0.0
    %706 = vmatpush2.xpose.msra.mxu0 0.0
    %707 = vmatprep.subr.mxu0 0.0
    %708 = vmatpush2.xpose.msra.mxu0 0.0
    %709 = vmatprep.subr.mxu0 0.0
    %710 = vmatpush2.xpose.msra.mxu0 0.0
    %711 = vmatprep.subr.mxu0 0.0
    %712 = vmatpush2.xpose.msra.mxu0 0.0
    %713 = vmatprep.subr.mxu0 0.0
    %714 = vmatpush2.xpose.msra.mxu0 0.0
    %715 = vmatprep.subr.mxu0 0.0
    %716 = vmatpush2.xpose.msra.mxu0 0.0
    %717 = vmatprep.subr.mxu0 0.0
    %718 = vmatpush2.xpose.msra.mxu0 0.0
    %719 = vmatprep.subr.mxu0 0.0
    %720 = vmatpush2.xpose.msra.mxu0 0.0
    %721 = vmatprep.subr.mxu0 0.0
    %722 = vmatpush2.xpose.msra.mxu0 0.0
    %723 = vmatprep.subr.mxu0 0.0
    %724 = vmatpush2.xpose.msra.mxu0 0.0
    %725 = vmatprep.subr.mxu0 0.0
    %726 = vmatpush2.xpose.msra.mxu0 0.0
    %727 = vmatprep.subr.mxu0 0.0
    %728 = vmatpush2.xpose.msra.mxu0 0.0
    %729 = vmatprep.subr.mxu0 0.0
    %730 = vmatpush2.xpose.msra.mxu0 0.0
    %731 = vmatprep.subr.mxu0 0.0
    %732 = vmatpush2.xpose.msra.mxu0 0.0
    %733 = vmatprep.mubr.f32.mxu0 0.0
    %734 = vmatmul.mubr.f32.gmra.mxu0 %v665
    %v735 = vpop.f32.mrf.mxu0
    %v736 = vadd.f32 %v265, %v735
    %v737 = vpop.f32.mrf.mxu0
    %738 = vdwg.mxu0
    %739 = vrot.lane.b32.xlu0 %v223, 120
    %v740 = vpop.permute.xlu0 %739
    %v741 = vsel %vm284, %v223, 0
    %v743 = vsel %vm284, %v740, 0
    %745 = vmatprep.subr.mxu0 0.0
    %746 = vmatpush1.xpose.msra.mxu0 0.0
    %747 = vmatprep.subr.mxu0 0.0
    %748 = vmatpush1.xpose.msra.mxu0 0.0
    %749 = vmatprep.subr.mxu0 0.0
    %750 = vmatpush1.xpose.msra.mxu0 0.0
    %751 = vmatprep.subr.mxu0 0.0
    %752 = vmatpush1.xpose.msra.mxu0 0.0
    %753 = vmatprep.subr.mxu0 0.0
    %754 = vmatpush1.xpose.msra.mxu0 0.0
    %755 = vmatprep.subr.mxu0 0.0
    %756 = vmatpush1.xpose.msra.mxu0 0.0
    %757 = vmatprep.subr.mxu0 0.0
    %758 = vmatpush1.xpose.msra.mxu0 0.0
    %759 = vmatprep.subr.mxu0 0.0
    %760 = vmatpush1.xpose.msra.mxu0 0.0
    %761 = vmatprep.subr.mxu0 0.0
    %762 = vmatpush1.xpose.msra.mxu0 0.0
    %763 = vmatprep.subr.mxu0 0.0
    %764 = vmatpush1.xpose.msra.mxu0 0.0
    %765 = vmatprep.subr.mxu0 0.0
    %766 = vmatpush1.xpose.msra.mxu0 0.0
    %767 = vmatprep.subr.mxu0 0.0
    %768 = vmatpush1.xpose.msra.mxu0 0.0
    %769 = vmatprep.subr.mxu0 0.0
    %770 = vmatpush1.xpose.msra.mxu0 0.0
    %771 = vmatprep.subr.mxu0 0.0
    %772 = vmatpush1.xpose.msra.mxu0 0.0
    %773 = vmatprep.subr.mxu0 0.0
    %774 = vmatpush1.xpose.msra.mxu0 0.0
    %775 = vmatprep.subr.mxu0 0.0
    %776 = vmatpush1.xpose.msra.mxu0 %v743
    %777 = vmatprep.subr.mxu0 0.0
    %778 = vmatpush2.xpose.msra.mxu0 0.0
    %779 = vmatprep.subr.mxu0 0.0
    %780 = vmatpush2.xpose.msra.mxu0 0.0
    %781 = vmatprep.subr.mxu0 0.0
    %782 = vmatpush2.xpose.msra.mxu0 0.0
    %783 = vmatprep.subr.mxu0 0.0
    %784 = vmatpush2.xpose.msra.mxu0 0.0
    %785 = vmatprep.subr.mxu0 0.0
    %786 = vmatpush2.xpose.msra.mxu0 0.0
    %787 = vmatprep.subr.mxu0 0.0
    %788 = vmatpush2.xpose.msra.mxu0 0.0
    %789 = vmatprep.subr.mxu0 0.0
    %790 = vmatpush2.xpose.msra.mxu0 0.0
    %791 = vmatprep.subr.mxu0 0.0
    %792 = vmatpush2.xpose.msra.mxu0 0.0
    %793 = vmatprep.subr.mxu0 0.0
    %794 = vmatpush2.xpose.msra.mxu0 0.0
    %795 = vmatprep.subr.mxu0 0.0
    %796 = vmatpush2.xpose.msra.mxu0 0.0
    %797 = vmatprep.subr.mxu0 0.0
    %798 = vmatpush2.xpose.msra.mxu0 0.0
    %799 = vmatprep.subr.mxu0 0.0
    %800 = vmatpush2.xpose.msra.mxu0 0.0
    %801 = vmatprep.subr.mxu0 0.0
    %802 = vmatpush2.xpose.msra.mxu0 0.0
    %803 = vmatprep.subr.mxu0 0.0
    %804 = vmatpush2.xpose.msra.mxu0 0.0
    %805 = vmatprep.subr.mxu0 0.0
    %806 = vmatpush2.xpose.msra.mxu0 0.0
    %807 = vmatprep.subr.mxu0 0.0
    %808 = vmatpush2.xpose.msra.mxu0 0.0
    %809 = vmatprep.mubr.f32.mxu0 0.0
    %810 = vmatmul.mubr.f32.gmra.mxu0 %v741
    %v811 = vpop.f32.mrf.mxu0
    %v812 = vadd.f32 %v269, %v811
    %v813 = vpop.f32.mrf.mxu0
    %814 = vdwg.mxu0
    %815 = vrot.lane.b32.xlu0 %v225, 120
    %v816 = vpop.permute.xlu0 %815
    %v817 = vsel %vm284, %v225, 0
    %v819 = vsel %vm284, %v816, 0
    %821 = vmatprep.subr.mxu0 0.0
    %822 = vmatpush1.xpose.msra.mxu0 0.0
    %823 = vmatprep.subr.mxu0 0.0
    %824 = vmatpush1.xpose.msra.mxu0 0.0
    %825 = vmatprep.subr.mxu0 0.0
    %826 = vmatpush1.xpose.msra.mxu0 0.0
    %827 = vmatprep.subr.mxu0 0.0
    %828 = vmatpush1.xpose.msra.mxu0 0.0
    %829 = vmatprep.subr.mxu0 0.0
    %830 = vmatpush1.xpose.msra.mxu0 0.0
    %831 = vmatprep.subr.mxu0 0.0
    %832 = vmatpush1.xpose.msra.mxu0 0.0
    %833 = vmatprep.subr.mxu0 0.0
    %834 = vmatpush1.xpose.msra.mxu0 0.0
    %835 = vmatprep.subr.mxu0 0.0
    %836 = vmatpush1.xpose.msra.mxu0 0.0
    %837 = vmatprep.subr.mxu0 0.0
    %838 = vmatpush1.xpose.msra.mxu0 0.0
    %839 = vmatprep.subr.mxu0 0.0
    %840 = vmatpush1.xpose.msra.mxu0 0.0
    %841 = vmatprep.subr.mxu0 0.0
    %842 = vmatpush1.xpose.msra.mxu0 0.0
    %843 = vmatprep.subr.mxu0 0.0
    %844 = vmatpush1.xpose.msra.mxu0 0.0
    %845 = vmatprep.subr.mxu0 0.0
    %846 = vmatpush1.xpose.msra.mxu0 0.0
    %847 = vmatprep.subr.mxu0 0.0
    %848 = vmatpush1.xpose.msra.mxu0 0.0
    %849 = vmatprep.subr.mxu0 0.0
    %850 = vmatpush1.xpose.msra.mxu0 0.0
    %851 = vmatprep.subr.mxu0 0.0
    %852 = vmatpush1.xpose.msra.mxu0 %v819
    %853 = vmatprep.subr.mxu0 0.0
    %854 = vmatpush2.xpose.msra.mxu0 0.0
    %855 = vmatprep.subr.mxu0 0.0
    %856 = vmatpush2.xpose.msra.mxu0 0.0
    %857 = vmatprep.subr.mxu0 0.0
    %858 = vmatpush2.xpose.msra.mxu0 0.0
    %859 = vmatprep.subr.mxu0 0.0
    %860 = vmatpush2.xpose.msra.mxu0 0.0
    %861 = vmatprep.subr.mxu0 0.0
    %862 = vmatpush2.xpose.msra.mxu0 0.0
    %863 = vmatprep.subr.mxu0 0.0
    %864 = vmatpush2.xpose.msra.mxu0 0.0
    %865 = vmatprep.subr.mxu0 0.0
    %866 = vmatpush2.xpose.msra.mxu0 0.0
    %867 = vmatprep.subr.mxu0 0.0
    %868 = vmatpush2.xpose.msra.mxu0 0.0
    %869 = vmatprep.subr.mxu0 0.0
    %870 = vmatpush2.xpose.msra.mxu0 0.0
    %871 = vmatprep.subr.mxu0 0.0
    %872 = vmatpush2.xpose.msra.mxu0 0.0
    %873 = vmatprep.subr.mxu0 0.0
    %874 = vmatpush2.xpose.msra.mxu0 0.0
    %875 = vmatprep.subr.mxu0 0.0
    %876 = vmatpush2.xpose.msra.mxu0 0.0
    %877 = vmatprep.subr.mxu0 0.0
    %878 = vmatpush2.xpose.msra.mxu0 0.0
    %879 = vmatprep.subr.mxu0 0.0
    %880 = vmatpush2.xpose.msra.mxu0 0.0
    %881 = vmatprep.subr.mxu0 0.0
    %882 = vmatpush2.xpose.msra.mxu0 0.0
    %883 = vmatprep.subr.mxu0 0.0
    %884 = vmatpush2.xpose.msra.mxu0 0.0
    %885 = vmatprep.mubr.f32.mxu0 0.0
    %886 = vmatmul.mubr.f32.gmra.mxu0 %v817
    %v887 = vpop.f32.mrf.mxu0
    %v888 = vadd.f32 %v273, %v887
    %v889 = vpop.f32.mrf.mxu0
    %890 = vdwg.mxu0
    %v891 = vsel %vm284, %v356, -inf
    %892 = vmax.xlane.f32.xlu0 %v891
    %v893 = vpop.xlane.xlu0 %892
    %v894 = vsel %vm284, %v432, -inf
    %895 = vmax.xlane.f32.xlu0 %v894
    %v896 = vpop.xlane.xlu0 %895
    %v897 = vsel %vm284, %v508, -inf
    %898 = vmax.xlane.f32.xlu0 %v897
    %v899 = vpop.xlane.xlu0 %898
    %v900 = vsel %vm284, %v584, -inf
    %901 = vmax.xlane.f32.xlu0 %v900
    %v902 = vpop.xlane.xlu0 %901
    %v903 = vsel %vm284, %v660, -inf
    %904 = vmax.xlane.f32.xlu0 %v903
    %v905 = vpop.xlane.xlu0 %904
    %v906 = vsel %vm284, %v736, -inf
    %907 = vmax.xlane.f32.xlu0 %v906
    %v908 = vpop.xlane.xlu0 %907
    %v909 = vsel %vm284, %v812, -inf
    %910 = vmax.xlane.f32.xlu0 %v909
    %v911 = vpop.xlane.xlu0 %910
    %v912 = vsel %vm284, %v888, -inf
    %913 = vmax.xlane.f32.xlu0 %v912
    %v914 = vpop.xlane.xlu0 %913
    %v915 = vsub.f32 %v356, %v893
    %v916 = vsub.f32 %v432, %v896
    %v917 = vsub.f32 %v508, %v899
    %v918 = vsub.f32 %v584, %v902
    %v919 = vsub.f32 %v660, %v905
    %v920 = vsub.f32 %v736, %v908
    %v921 = vsub.f32 %v812, %v911
    %v922 = vsub.f32 %v888, %v914
    %v923 = vmul.f32 %v915, 1.442695
    %v924 = vpow.pop %v923
    %v925 = vmul.f32 %v916, 1.442695
    %v926 = vpow.pop %v925
    %v927 = vmul.f32 %v917, 1.442695
    %v928 = vpow.pop %v927
    %v929 = vmul.f32 %v918, 1.442695
    %v930 = vpow.pop %v929
    %v931 = vmul.f32 %v919, 1.442695
    %v932 = vpow.pop %v931
    %v933 = vmul.f32 %v920, 1.442695
    %v934 = vpow.pop %v933
    %v935 = vmul.f32 %v921, 1.442695
    %v936 = vpow.pop %v935
    %v937 = vmul.f32 %v922, 1.442695
    %v938 = vpow.pop %v937
    %v939 = vsel %vm284, %v924, 0.0
    %940 = vadd.xlane.f32.xlu0 %v939
    %v941 = vpop.xlane.xlu0 %940
    %v942 = vsel %vm284, %v926, 0.0
    %943 = vadd.xlane.f32.xlu0 %v942
    %v944 = vpop.xlane.xlu0 %943
    %v945 = vsel %vm284, %v928, 0.0
    %946 = vadd.xlane.f32.xlu0 %v945
    %v947 = vpop.xlane.xlu0 %946
    %v948 = vsel %vm284, %v930, 0.0
    %949 = vadd.xlane.f32.xlu0 %v948
    %v950 = vpop.xlane.xlu0 %949
    %v951 = vsel %vm284, %v932, 0.0
    %952 = vadd.xlane.f32.xlu0 %v951
    %v953 = vpop.xlane.xlu0 %952
    %v954 = vsel %vm284, %v934, 0.0
    %955 = vadd.xlane.f32.xlu0 %v954
    %v956 = vpop.xlane.xlu0 %955
    %v957 = vsel %vm284, %v936, 0.0
    %958 = vadd.xlane.f32.xlu0 %v957
    %v959 = vpop.xlane.xlu0 %958
    %v960 = vsel %vm284, %v938, 0.0
    %961 = vadd.xlane.f32.xlu0 %v960
    %v962 = vpop.xlane.xlu0 %961
    %v963 = vrcp.pop %v941
    %v964 = vrcp.pop %v944
    %v965 = vrcp.pop %v947
    %v966 = vrcp.pop %v950
    %v967 = vrcp.pop %v953
    %v968 = vrcp.pop %v956
    %v969 = vrcp.pop %v959
    %v970 = vrcp.pop %v962
    %v971 = vmul.f32 %v924, %v963
    %v972 = vmul.f32 %v926, %v964
    %v973 = vmul.f32 %v928, %v965
    %v974 = vmul.f32 %v930, %v966
    %v975 = vmul.f32 %v932, %v967
    %v976 = vmul.f32 %v934, %v968
    %v977 = vmul.f32 %v936, %v969
    %v978 = vmul.f32 %v938, %v970
    %979 = vrot.lane.b32.xlu0 %v204, 112
    %v980 = vpop.permute.xlu0 %979
    %v983 = vsel %vm284, %v971, 0
    %985 = vmatprep.subr.mxu0 0.0
    %986 = vmatpush1.msra.mxu0 0.0
    %987 = vmatprep.subr.mxu0 0.0
    %988 = vmatpush1.msra.mxu0 0.0
    %989 = vmatprep.subr.mxu0 0.0
    %990 = vmatpush1.msra.mxu0 0.0
    %991 = vmatprep.subr.mxu0 0.0
    %992 = vmatpush1.msra.mxu0 0.0
    %993 = vmatprep.subr.mxu0 0.0
    %994 = vmatpush1.msra.mxu0 0.0
    %995 = vmatprep.subr.mxu0 0.0
    %996 = vmatpush1.msra.mxu0 0.0
    %997 = vmatprep.subr.mxu0 0.0
    %998 = vmatpush1.msra.mxu0 0.0
    %999 = vmatprep.subr.mxu0 0.0
    %1000 = vmatpush1.msra.mxu0 0.0
    %1001 = vmatprep.subr.mxu0 0.0
    %1002 = vmatpush1.msra.mxu0 0.0
    %1003 = vmatprep.subr.mxu0 0.0
    %1004 = vmatpush1.msra.mxu0 0.0
    %1005 = vmatprep.subr.mxu0 0.0
    %1006 = vmatpush1.msra.mxu0 0.0
    %1007 = vmatprep.subr.mxu0 0.0
    %1008 = vmatpush1.msra.mxu0 0.0
    %1009 = vmatprep.subr.mxu0 0.0
    %1010 = vmatpush1.msra.mxu0 0.0
    %1011 = vmatprep.subr.mxu0 0.0
    %1012 = vmatpush1.msra.mxu0 0.0
    %1013 = vmatprep.subr.mxu0 0.0
    %1014 = vmatpush1.msra.mxu0 0.0
    %1015 = vmatprep.subr.mxu0 0.0
    %1016 = vmatpush1.msra.mxu0 %v980
    %1017 = vmatprep.subr.mxu0 0.0
    %1018 = vmatpush2.msra.mxu0 0.0
    %1019 = vmatprep.subr.mxu0 0.0
    %1020 = vmatpush2.msra.mxu0 0.0
    %1021 = vmatprep.subr.mxu0 0.0
    %1022 = vmatpush2.msra.mxu0 0.0
    %1023 = vmatprep.subr.mxu0 0.0
    %1024 = vmatpush2.msra.mxu0 0.0
    %1025 = vmatprep.subr.mxu0 0.0
    %1026 = vmatpush2.msra.mxu0 0.0
    %1027 = vmatprep.subr.mxu0 0.0
    %1028 = vmatpush2.msra.mxu0 0.0
    %1029 = vmatprep.subr.mxu0 0.0
    %1030 = vmatpush2.msra.mxu0 0.0
    %1031 = vmatprep.subr.mxu0 0.0
    %1032 = vmatpush2.msra.mxu0 0.0
    %1033 = vmatprep.subr.mxu0 0.0
    %1034 = vmatpush2.msra.mxu0 0.0
    %1035 = vmatprep.subr.mxu0 0.0
    %1036 = vmatpush2.msra.mxu0 0.0
    %1037 = vmatprep.subr.mxu0 0.0
    %1038 = vmatpush2.msra.mxu0 0.0
    %1039 = vmatprep.subr.mxu0 0.0
    %1040 = vmatpush2.msra.mxu0 0.0
    %1041 = vmatprep.subr.mxu0 0.0
    %1042 = vmatpush2.msra.mxu0 0.0
    %1043 = vmatprep.subr.mxu0 0.0
    %1044 = vmatpush2.msra.mxu0 0.0
    %1045 = vmatprep.subr.mxu0 0.0
    %1046 = vmatpush2.msra.mxu0 0.0
    %1047 = vmatprep.subr.mxu0 0.0
    %1048 = vmatpush2.msra.mxu0 0.0
    %1049 = vmatprep.mubr.f32.mxu0 0.0
    %1050 = vmatmul.mubr.f32.gmra.mxu0 %v983
    %v1051 = vpop.f32.mrf.mxu0
    %v1052 = vadd.f32 0.0, %v1051
    %v1053 = vpop.f32.mrf.mxu0
    %1054 = vdwg.mxu0
    %1055 = vrot.lane.b32.xlu0 %v209, 112
    %v1056 = vpop.permute.xlu0 %1055
    %v1059 = vsel %vm284, %v972, 0
    %1061 = vmatprep.subr.mxu0 0.0
    %1062 = vmatpush1.msra.mxu0 0.0
    %1063 = vmatprep.subr.mxu0 0.0
    %1064 = vmatpush1.msra.mxu0 0.0
    %1065 = vmatprep.subr.mxu0 0.0
    %1066 = vmatpush1.msra.mxu0 0.0
    %1067 = vmatprep.subr.mxu0 0.0
    %1068 = vmatpush1.msra.mxu0 0.0
    %1069 = vmatprep.subr.mxu0 0.0
    %1070 = vmatpush1.msra.mxu0 0.0
    %1071 = vmatprep.subr.mxu0 0.0
    %1072 = vmatpush1.msra.mxu0 0.0
    %1073 = vmatprep.subr.mxu0 0.0
    %1074 = vmatpush1.msra.mxu0 0.0
    %1075 = vmatprep.subr.mxu0 0.0
    %1076 = vmatpush1.msra.mxu0 0.0
    %1077 = vmatprep.subr.mxu0 0.0
    %1078 = vmatpush1.msra.mxu0 0.0
    %1079 = vmatprep.subr.mxu0 0.0
    %1080 = vmatpush1.msra.mxu0 0.0
    %1081 = vmatprep.subr.mxu0 0.0
    %1082 = vmatpush1.msra.mxu0 0.0
    %1083 = vmatprep.subr.mxu0 0.0
    %1084 = vmatpush1.msra.mxu0 0.0
    %1085 = vmatprep.subr.mxu0 0.0
    %1086 = vmatpush1.msra.mxu0 0.0
    %1087 = vmatprep.subr.mxu0 0.0
    %1088 = vmatpush1.msra.mxu0 0.0
    %1089 = vmatprep.subr.mxu0 0.0
    %1090 = vmatpush1.msra.mxu0 0.0
    %1091 = vmatprep.subr.mxu0 0.0
    %1092 = vmatpush1.msra.mxu0 %v1056
    %1093 = vmatprep.subr.mxu0 0.0
    %1094 = vmatpush2.msra.mxu0 0.0
    %1095 = vmatprep.subr.mxu0 0.0
    %1096 = vmatpush2.msra.mxu0 0.0
    %1097 = vmatprep.subr.mxu0 0.0
    %1098 = vmatpush2.msra.mxu0 0.0
    %1099 = vmatprep.subr.mxu0 0.0
    %1100 = vmatpush2.msra.mxu0 0.0
    %1101 = vmatprep.subr.mxu0 0.0
    %1102 = vmatpush2.msra.mxu0 0.0
    %1103 = vmatprep.subr.mxu0 0.0
    %1104 = vmatpush2.msra.mxu0 0.0
    %1105 = vmatprep.subr.mxu0 0.0
    %1106 = vmatpush2.msra.mxu0 0.0
    %1107 = vmatprep.subr.mxu0 0.0
    %1108 = vmatpush2.msra.mxu0 0.0
    %1109 = vmatprep.subr.mxu0 0.0
    %1110 = vmatpush2.msra.mxu0 0.0
    %1111 = vmatprep.subr.mxu0 0.0
    %1112 = vmatpush2.msra.mxu0 0.0
    %1113 = vmatprep.subr.mxu0 0.0
    %1114 = vmatpush2.msra.mxu0 0.0
    %1115 = vmatprep.subr.mxu0 0.0
    %1116 = vmatpush2.msra.mxu0 0.0
    %1117 = vmatprep.subr.mxu0 0.0
    %1118 = vmatpush2.msra.mxu0 0.0
    %1119 = vmatprep.subr.mxu0 0.0
    %1120 = vmatpush2.msra.mxu0 0.0
    %1121 = vmatprep.subr.mxu0 0.0
    %1122 = vmatpush2.msra.mxu0 0.0
    %1123 = vmatprep.subr.mxu0 0.0
    %1124 = vmatpush2.msra.mxu0 0.0
    %1125 = vmatprep.mubr.f32.mxu0 0.0
    %1126 = vmatmul.mubr.f32.gmra.mxu0 %v1059
    %v1127 = vpop.f32.mrf.mxu0
    %v1128 = vadd.f32 0.0, %v1127
    %v1129 = vpop.f32.mrf.mxu0
    %1130 = vdwg.mxu0
    %1131 = vrot.lane.b32.xlu0 %v215, 112
    %v1132 = vpop.permute.xlu0 %1131
    %v1135 = vsel %vm284, %v973, 0
    %1137 = vmatprep.subr.mxu0 0.0
    %1138 = vmatpush1.msra.mxu0 0.0
    %1139 = vmatprep.subr.mxu0 0.0
    %1140 = vmatpush1.msra.mxu0 0.0
    %1141 = vmatprep.subr.mxu0 0.0
    %1142 = vmatpush1.msra.mxu0 0.0
    %1143 = vmatprep.subr.mxu0 0.0
    %1144 = vmatpush1.msra.mxu0 0.0
    %1145 = vmatprep.subr.mxu0 0.0
    %1146 = vmatpush1.msra.mxu0 0.0
    %1147 = vmatprep.subr.mxu0 0.0
    %1148 = vmatpush1.msra.mxu0 0.0
    %1149 = vmatprep.subr.mxu0 0.0
    %1150 = vmatpush1.msra.mxu0 0.0
    %1151 = vmatprep.subr.mxu0 0.0
    %1152 = vmatpush1.msra.mxu0 0.0
    %1153 = vmatprep.subr.mxu0 0.0
    %1154 = vmatpush1.msra.mxu0 0.0
    %1155 = vmatprep.subr.mxu0 0.0
    %1156 = vmatpush1.msra.mxu0 0.0
    %1157 = vmatprep.subr.mxu0 0.0
    %1158 = vmatpush1.msra.mxu0 0.0
    %1159 = vmatprep.subr.mxu0 0.0
    %1160 = vmatpush1.msra.mxu0 0.0
    %1161 = vmatprep.subr.mxu0 0.0
    %1162 = vmatpush1.msra.mxu0 0.0
    %1163 = vmatprep.subr.mxu0 0.0
    %1164 = vmatpush1.msra.mxu0 0.0
    %1165 = vmatprep.subr.mxu0 0.0
    %1166 = vmatpush1.msra.mxu0 0.0
    %1167 = vmatprep.subr.mxu0 0.0
    %1168 = vmatpush1.msra.mxu0 %v1132
    %1169 = vmatprep.subr.mxu0 0.0
    %1170 = vmatpush2.msra.mxu0 0.0
    %1171 = vmatprep.subr.mxu0 0.0
    %1172 = vmatpush2.msra.mxu0 0.0
    %1173 = vmatprep.subr.mxu0 0.0
    %1174 = vmatpush2.msra.mxu0 0.0
    %1175 = vmatprep.subr.mxu0 0.0
    %1176 = vmatpush2.msra.mxu0 0.0
    %1177 = vmatprep.subr.mxu0 0.0
    %1178 = vmatpush2.msra.mxu0 0.0
    %1179 = vmatprep.subr.mxu0 0.0
    %1180 = vmatpush2.msra.mxu0 0.0
    %1181 = vmatprep.subr.mxu0 0.0
    %1182 = vmatpush2.msra.mxu0 0.0
    %1183 = vmatprep.subr.mxu0 0.0
    %1184 = vmatpush2.msra.mxu0 0.0
    %1185 = vmatprep.subr.mxu0 0.0
    %1186 = vmatpush2.msra.mxu0 0.0
    %1187 = vmatprep.subr.mxu0 0.0
    %1188 = vmatpush2.msra.mxu0 0.0
    %1189 = vmatprep.subr.mxu0 0.0
    %1190 = vmatpush2.msra.mxu0 0.0
    %1191 = vmatprep.subr.mxu0 0.0
    %1192 = vmatpush2.msra.mxu0 0.0
    %1193 = vmatprep.subr.mxu0 0.0
    %1194 = vmatpush2.msra.mxu0 0.0
    %1195 = vmatprep.subr.mxu0 0.0
    %1196 = vmatpush2.msra.mxu0 0.0
    %1197 = vmatprep.subr.mxu0 0.0
    %1198 = vmatpush2.msra.mxu0 0.0
    %1199 = vmatprep.subr.mxu0 0.0
    %1200 = vmatpush2.msra.mxu0 0.0
    %1201 = vmatprep.mubr.f32.mxu0 0.0
    %1202 = vmatmul.mubr.f32.gmra.mxu0 %v1135
    %v1203 = vpop.f32.mrf.mxu0
    %v1204 = vadd.f32 0.0, %v1203
    %v1205 = vpop.f32.mrf.mxu0
    %1206 = vdwg.mxu0
    %1207 = vrot.lane.b32.xlu0 %v217, 112
    %v1208 = vpop.permute.xlu0 %1207
    %v1211 = vsel %vm284, %v974, 0
    %1213 = vmatprep.subr.mxu0 0.0
    %1214 = vmatpush1.msra.mxu0 0.0
    %1215 = vmatprep.subr.mxu0 0.0
    %1216 = vmatpush1.msra.mxu0 0.0
    %1217 = vmatprep.subr.mxu0 0.0
    %1218 = vmatpush1.msra.mxu0 0.0
    %1219 = vmatprep.subr.mxu0 0.0
    %1220 = vmatpush1.msra.mxu0 0.0
    %1221 = vmatprep.subr.mxu0 0.0
    %1222 = vmatpush1.msra.mxu0 0.0
    %1223 = vmatprep.subr.mxu0 0.0
    %1224 = vmatpush1.msra.mxu0 0.0
    %1225 = vmatprep.subr.mxu0 0.0
    %1226 = vmatpush1.msra.mxu0 0.0
    %1227 = vmatprep.subr.mxu0 0.0
    %1228 = vmatpush1.msra.mxu0 0.0
    %1229 = vmatprep.subr.mxu0 0.0
    %1230 = vmatpush1.msra.mxu0 0.0
    %1231 = vmatprep.subr.mxu0 0.0
    %1232 = vmatpush1.msra.mxu0 0.0
    %1233 = vmatprep.subr.mxu0 0.0
    %1234 = vmatpush1.msra.mxu0 0.0
    %1235 = vmatprep.subr.mxu0 0.0
    %1236 = vmatpush1.msra.mxu0 0.0
    %1237 = vmatprep.subr.mxu0 0.0
    %1238 = vmatpush1.msra.mxu0 0.0
    %1239 = vmatprep.subr.mxu0 0.0
    %1240 = vmatpush1.msra.mxu0 0.0
    %1241 = vmatprep.subr.mxu0 0.0
    %1242 = vmatpush1.msra.mxu0 0.0
    %1243 = vmatprep.subr.mxu0 0.0
    %1244 = vmatpush1.msra.mxu0 %v1208
    %1245 = vmatprep.subr.mxu0 0.0
    %1246 = vmatpush2.msra.mxu0 0.0
    %1247 = vmatprep.subr.mxu0 0.0
    %1248 = vmatpush2.msra.mxu0 0.0
    %1249 = vmatprep.subr.mxu0 0.0
    %1250 = vmatpush2.msra.mxu0 0.0
    %1251 = vmatprep.subr.mxu0 0.0
    %1252 = vmatpush2.msra.mxu0 0.0
    %1253 = vmatprep.subr.mxu0 0.0
    %1254 = vmatpush2.msra.mxu0 0.0
    %1255 = vmatprep.subr.mxu0 0.0
    %1256 = vmatpush2.msra.mxu0 0.0
    %1257 = vmatprep.subr.mxu0 0.0
    %1258 = vmatpush2.msra.mxu0 0.0
    %1259 = vmatprep.subr.mxu0 0.0
    %1260 = vmatpush2.msra.mxu0 0.0
    %1261 = vmatprep.subr.mxu0 0.0
    %1262 = vmatpush2.msra.mxu0 0.0
    %1263 = vmatprep.subr.mxu0 0.0
    %1264 = vmatpush2.msra.mxu0 0.0
    %1265 = vmatprep.subr.mxu0 0.0
    %1266 = vmatpush2.msra.mxu0 0.0
    %1267 = vmatprep.subr.mxu0 0.0
    %1268 = vmatpush2.msra.mxu0 0.0
    %1269 = vmatprep.subr.mxu0 0.0
    %1270 = vmatpush2.msra.mxu0 0.0
    %1271 = vmatprep.subr.mxu0 0.0
    %1272 = vmatpush2.msra.mxu0 0.0
    %1273 = vmatprep.subr.mxu0 0.0
    %1274 = vmatpush2.msra.mxu0 0.0
    %1275 = vmatprep.subr.mxu0 0.0
    %1276 = vmatpush2.msra.mxu0 0.0
    %1277 = vmatprep.mubr.f32.mxu0 0.0
    %1278 = vmatmul.mubr.f32.gmra.mxu0 %v1211
    %v1279 = vpop.f32.mrf.mxu0
    %v1280 = vadd.f32 0.0, %v1279
    %v1281 = vpop.f32.mrf.mxu0
    %1282 = vdwg.mxu0
    %1283 = vrot.lane.b32.xlu0 %v219, 112
    %v1284 = vpop.permute.xlu0 %1283
    %v1287 = vsel %vm284, %v975, 0
    %1289 = vmatprep.subr.mxu0 0.0
    %1290 = vmatpush1.msra.mxu0 0.0
    %1291 = vmatprep.subr.mxu0 0.0
    %1292 = vmatpush1.msra.mxu0 0.0
    %1293 = vmatprep.subr.mxu0 0.0
    %1294 = vmatpush1.msra.mxu0 0.0
    %1295 = vmatprep.subr.mxu0 0.0
    %1296 = vmatpush1.msra.mxu0 0.0
    %1297 = vmatprep.subr.mxu0 0.0
    %1298 = vmatpush1.msra.mxu0 0.0
    %1299 = vmatprep.subr.mxu0 0.0
    %1300 = vmatpush1.msra.mxu0 0.0
    %1301 = vmatprep.subr.mxu0 0.0
    %1302 = vmatpush1.msra.mxu0 0.0
    %1303 = vmatprep.subr.mxu0 0.0
    %1304 = vmatpush1.msra.mxu0 0.0
    %1305 = vmatprep.subr.mxu0 0.0
    %1306 = vmatpush1.msra.mxu0 0.0
    %1307 = vmatprep.subr.mxu0 0.0
    %1308 = vmatpush1.msra.mxu0 0.0
    %1309 = vmatprep.subr.mxu0 0.0
    %1310 = vmatpush1.msra.mxu0 0.0
    %1311 = vmatprep.subr.mxu0 0.0
    %1312 = vmatpush1.msra.mxu0 0.0
    %1313 = vmatprep.subr.mxu0 0.0
    %1314 = vmatpush1.msra.mxu0 0.0
    %1315 = vmatprep.subr.mxu0 0.0
    %1316 = vmatpush1.msra.mxu0 0.0
    %1317 = vmatprep.subr.mxu0 0.0
    %1318 = vmatpush1.msra.mxu0 0.0
    %1319 = vmatprep.subr.mxu0 0.0
    %1320 = vmatpush1.msra.mxu0 %v1284
    %1321 = vmatprep.subr.mxu0 0.0
    %1322 = vmatpush2.msra.mxu0 0.0
    %1323 = vmatprep.subr.mxu0 0.0
    %1324 = vmatpush2.msra.mxu0 0.0
    %1325 = vmatprep.subr.mxu0 0.0
    %1326 = vmatpush2.msra.mxu0 0.0
    %1327 = vmatprep.subr.mxu0 0.0
    %1328 = vmatpush2.msra.mxu0 0.0
    %1329 = vmatprep.subr.mxu0 0.0
    %1330 = vmatpush2.msra.mxu0 0.0
    %1331 = vmatprep.subr.mxu0 0.0
    %1332 = vmatpush2.msra.mxu0 0.0
    %1333 = vmatprep.subr.mxu0 0.0
    %1334 = vmatpush2.msra.mxu0 0.0
    %1335 = vmatprep.subr.mxu0 0.0
    %1336 = vmatpush2.msra.mxu0 0.0
    %1337 = vmatprep.subr.mxu0 0.0
    %1338 = vmatpush2.msra.mxu0 0.0
    %1339 = vmatprep.subr.mxu0 0.0
    %1340 = vmatpush2.msra.mxu0 0.0
    %1341 = vmatprep.subr.mxu0 0.0
    %1342 = vmatpush2.msra.mxu0 0.0
    %1343 = vmatprep.subr.mxu0 0.0
    %1344 = vmatpush2.msra.mxu0 0.0
    %1345 = vmatprep.subr.mxu0 0.0
    %1346 = vmatpush2.msra.mxu0 0.0
    %1347 = vmatprep.subr.mxu0 0.0
    %1348 = vmatpush2.msra.mxu0 0.0
    %1349 = vmatprep.subr.mxu0 0.0
    %1350 = vmatpush2.msra.mxu0 0.0
    %1351 = vmatprep.subr.mxu0 0.0
    %1352 = vmatpush2.msra.mxu0 0.0
    %1353 = vmatprep.mubr.f32.mxu0 0.0
    %1354 = vmatmul.mubr.f32.gmra.mxu0 %v1287
    %v1355 = vpop.f32.mrf.mxu0
    %v1356 = vadd.f32 0.0, %v1355
    %v1357 = vpop.f32.mrf.mxu0
    %1358 = vdwg.mxu0
    %1359 = vrot.lane.b32.xlu0 %v221, 112
    %v1360 = vpop.permute.xlu0 %1359
    %v1363 = vsel %vm284, %v976, 0
    %1365 = vmatprep.subr.mxu0 0.0
    %1366 = vmatpush1.msra.mxu0 0.0
    %1367 = vmatprep.subr.mxu0 0.0
    %1368 = vmatpush1.msra.mxu0 0.0
    %1369 = vmatprep.subr.mxu0 0.0
    %1370 = vmatpush1.msra.mxu0 0.0
    %1371 = vmatprep.subr.mxu0 0.0
    %1372 = vmatpush1.msra.mxu0 0.0
    %1373 = vmatprep.subr.mxu0 0.0
    %1374 = vmatpush1.msra.mxu0 0.0
    %1375 = vmatprep.subr.mxu0 0.0
    %1376 = vmatpush1.msra.mxu0 0.0
    %1377 = vmatprep.subr.mxu0 0.0
    %1378 = vmatpush1.msra.mxu0 0.0
    %1379 = vmatprep.subr.mxu0 0.0
    %1380 = vmatpush1.msra.mxu0 0.0
    %1381 = vmatprep.subr.mxu0 0.0
    %1382 = vmatpush1.msra.mxu0 0.0
    %1383 = vmatprep.subr.mxu0 0.0
    %1384 = vmatpush1.msra.mxu0 0.0
    %1385 = vmatprep.subr.mxu0 0.0
    %1386 = vmatpush1.msra.mxu0 0.0
    %1387 = vmatprep.subr.mxu0 0.0
    %1388 = vmatpush1.msra.mxu0 0.0
    %1389 = vmatprep.subr.mxu0 0.0
    %1390 = vmatpush1.msra.mxu0 0.0
    %1391 = vmatprep.subr.mxu0 0.0
    %1392 = vmatpush1.msra.mxu0 0.0
    %1393 = vmatprep.subr.mxu0 0.0
    %1394 = vmatpush1.msra.mxu0 0.0
    %1395 = vmatprep.subr.mxu0 0.0
    %1396 = vmatpush1.msra.mxu0 %v1360
    %1397 = vmatprep.subr.mxu0 0.0
    %1398 = vmatpush2.msra.mxu0 0.0
    %1399 = vmatprep.subr.mxu0 0.0
    %1400 = vmatpush2.msra.mxu0 0.0
    %1401 = vmatprep.subr.mxu0 0.0
    %1402 = vmatpush2.msra.mxu0 0.0
    %1403 = vmatprep.subr.mxu0 0.0
    %1404 = vmatpush2.msra.mxu0 0.0
    %1405 = vmatprep.subr.mxu0 0.0
    %1406 = vmatpush2.msra.mxu0 0.0
    %1407 = vmatprep.subr.mxu0 0.0
    %1408 = vmatpush2.msra.mxu0 0.0
    %1409 = vmatprep.subr.mxu0 0.0
    %1410 = vmatpush2.msra.mxu0 0.0
    %1411 = vmatprep.subr.mxu0 0.0
    %1412 = vmatpush2.msra.mxu0 0.0
    %1413 = vmatprep.subr.mxu0 0.0
    %1414 = vmatpush2.msra.mxu0 0.0
    %1415 = vmatprep.subr.mxu0 0.0
    %1416 = vmatpush2.msra.mxu0 0.0
    %1417 = vmatprep.subr.mxu0 0.0
    %1418 = vmatpush2.msra.mxu0 0.0
    %1419 = vmatprep.subr.mxu0 0.0
    %1420 = vmatpush2.msra.mxu0 0.0
    %1421 = vmatprep.subr.mxu0 0.0
    %1422 = vmatpush2.msra.mxu0 0.0
    %1423 = vmatprep.subr.mxu0 0.0
    %1424 = vmatpush2.msra.mxu0 0.0
    %1425 = vmatprep.subr.mxu0 0.0
    %1426 = vmatpush2.msra.mxu0 0.0
    %1427 = vmatprep.subr.mxu0 0.0
    %1428 = vmatpush2.msra.mxu0 0.0
    %1429 = vmatprep.mubr.f32.mxu0 0.0
    %1430 = vmatmul.mubr.f32.gmra.mxu0 %v1363
    %v1431 = vpop.f32.mrf.mxu0
    %v1432 = vadd.f32 0.0, %v1431
    %v1433 = vpop.f32.mrf.mxu0
    %1434 = vdwg.mxu0
    %1435 = vrot.lane.b32.xlu0 %v223, 112
    %v1436 = vpop.permute.xlu0 %1435
    %v1439 = vsel %vm284, %v977, 0
    %1441 = vmatprep.subr.mxu0 0.0
    %1442 = vmatpush1.msra.mxu0 0.0
    %1443 = vmatprep.subr.mxu0 0.0
    %1444 = vmatpush1.msra.mxu0 0.0
    %1445 = vmatprep.subr.mxu0 0.0
    %1446 = vmatpush1.msra.mxu0 0.0
    %1447 = vmatprep.subr.mxu0 0.0
    %1448 = vmatpush1.msra.mxu0 0.0
    %1449 = vmatprep.subr.mxu0 0.0
    %1450 = vmatpush1.msra.mxu0 0.0
    %1451 = vmatprep.subr.mxu0 0.0
    %1452 = vmatpush1.msra.mxu0 0.0
    %1453 = vmatprep.subr.mxu0 0.0
    %1454 = vmatpush1.msra.mxu0 0.0
    %1455 = vmatprep.subr.mxu0 0.0
    %1456 = vmatpush1.msra.mxu0 0.0
    %1457 = vmatprep.subr.mxu0 0.0
    %1458 = vmatpush1.msra.mxu0 0.0
    %1459 = vmatprep.subr.mxu0 0.0
    %1460 = vmatpush1.msra.mxu0 0.0
    %1461 = vmatprep.subr.mxu0 0.0
    %1462 = vmatpush1.msra.mxu0 0.0
    %1463 = vmatprep.subr.mxu0 0.0
    %1464 = vmatpush1.msra.mxu0 0.0
    %1465 = vmatprep.subr.mxu0 0.0
    %1466 = vmatpush1.msra.mxu0 0.0
    %1467 = vmatprep.subr.mxu0 0.0
    %1468 = vmatpush1.msra.mxu0 0.0
    %1469 = vmatprep.subr.mxu0 0.0
    %1470 = vmatpush1.msra.mxu0 0.0
    %1471 = vmatprep.subr.mxu0 0.0
    %1472 = vmatpush1.msra.mxu0 %v1436
    %1473 = vmatprep.subr.mxu0 0.0
    %1474 = vmatpush2.msra.mxu0 0.0
    %1475 = vmatprep.subr.mxu0 0.0
    %1476 = vmatpush2.msra.mxu0 0.0
    %1477 = vmatprep.subr.mxu0 0.0
    %1478 = vmatpush2.msra.mxu0 0.0
    %1479 = vmatprep.subr.mxu0 0.0
    %1480 = vmatpush2.msra.mxu0 0.0
    %1481 = vmatprep.subr.mxu0 0.0
    %1482 = vmatpush2.msra.mxu0 0.0
    %1483 = vmatprep.subr.mxu0 0.0
    %1484 = vmatpush2.msra.mxu0 0.0
    %1485 = vmatprep.subr.mxu0 0.0
    %1486 = vmatpush2.msra.mxu0 0.0
    %1487 = vmatprep.subr.mxu0 0.0
    %1488 = vmatpush2.msra.mxu0 0.0
    %1489 = vmatprep.subr.mxu0 0.0
    %1490 = vmatpush2.msra.mxu0 0.0
    %1491 = vmatprep.subr.mxu0 0.0
    %1492 = vmatpush2.msra.mxu0 0.0
    %1493 = vmatprep.subr.mxu0 0.0
    %1494 = vmatpush2.msra.mxu0 0.0
    %1495 = vmatprep.subr.mxu0 0.0
    %1496 = vmatpush2.msra.mxu0 0.0
    %1497 = vmatprep.subr.mxu0 0.0
    %1498 = vmatpush2.msra.mxu0 0.0
    %1499 = vmatprep.subr.mxu0 0.0
    %1500 = vmatpush2.msra.mxu0 0.0
    %1501 = vmatprep.subr.mxu0 0.0
    %1502 = vmatpush2.msra.mxu0 0.0
    %1503 = vmatprep.subr.mxu0 0.0
    %1504 = vmatpush2.msra.mxu0 0.0
    %1505 = vmatprep.mubr.f32.mxu0 0.0
    %1506 = vmatmul.mubr.f32.gmra.mxu0 %v1439
    %v1507 = vpop.f32.mrf.mxu0
    %v1508 = vadd.f32 0.0, %v1507
    %v1509 = vpop.f32.mrf.mxu0
    %1510 = vdwg.mxu0
    %1511 = vrot.lane.b32.xlu0 %v225, 112
    %v1512 = vpop.permute.xlu0 %1511
    %v1515 = vsel %vm284, %v978, 0
    %1517 = vmatprep.subr.mxu0 0.0
    %1518 = vmatpush1.msra.mxu0 0.0
    %1519 = vmatprep.subr.mxu0 0.0
    %1520 = vmatpush1.msra.mxu0 0.0
    %1521 = vmatprep.subr.mxu0 0.0
    %1522 = vmatpush1.msra.mxu0 0.0
    %1523 = vmatprep.subr.mxu0 0.0
    %1524 = vmatpush1.msra.mxu0 0.0
    %1525 = vmatprep.subr.mxu0 0.0
    %1526 = vmatpush1.msra.mxu0 0.0
    %1527 = vmatprep.subr.mxu0 0.0
    %1528 = vmatpush1.msra.mxu0 0.0
    %1529 = vmatprep.subr.mxu0 0.0
    %1530 = vmatpush1.msra.mxu0 0.0
    %1531 = vmatprep.subr.mxu0 0.0
    %1532 = vmatpush1.msra.mxu0 0.0
    %1533 = vmatprep.subr.mxu0 0.0
    %1534 = vmatpush1.msra.mxu0 0.0
    %1535 = vmatprep.subr.mxu0 0.0
    %1536 = vmatpush1.msra.mxu0 0.0
    %1537 = vmatprep.subr.mxu0 0.0
    %1538 = vmatpush1.msra.mxu0 0.0
    %1539 = vmatprep.subr.mxu0 0.0
    %1540 = vmatpush1.msra.mxu0 0.0
    %1541 = vmatprep.subr.mxu0 0.0
    %1542 = vmatpush1.msra.mxu0 0.0
    %1543 = vmatprep.subr.mxu0 0.0
    %1544 = vmatpush1.msra.mxu0 0.0
    %1545 = vmatprep.subr.mxu0 0.0
    %1546 = vmatpush1.msra.mxu0 0.0
    %1547 = vmatprep.subr.mxu0 0.0
    %1548 = vmatpush1.msra.mxu0 %v1512
    %1549 = vmatprep.subr.mxu0 0.0
    %1550 = vmatpush2.msra.mxu0 0.0
    %1551 = vmatprep.subr.mxu0 0.0
    %1552 = vmatpush2.msra.mxu0 0.0
    %1553 = vmatprep.subr.mxu0 0.0
    %1554 = vmatpush2.msra.mxu0 0.0
    %1555 = vmatprep.subr.mxu0 0.0
    %1556 = vmatpush2.msra.mxu0 0.0
    %1557 = vmatprep.subr.mxu0 0.0
    %1558 = vmatpush2.msra.mxu0 0.0
    %1559 = vmatprep.subr.mxu0 0.0
    %1560 = vmatpush2.msra.mxu0 0.0
    %1561 = vmatprep.subr.mxu0 0.0
    %1562 = vmatpush2.msra.mxu0 0.0
    %1563 = vmatprep.subr.mxu0 0.0
    %1564 = vmatpush2.msra.mxu0 0.0
    %1565 = vmatprep.subr.mxu0 0.0
    %1566 = vmatpush2.msra.mxu0 0.0
    %1567 = vmatprep.subr.mxu0 0.0
    %1568 = vmatpush2.msra.mxu0 0.0
    %1569 = vmatprep.subr.mxu0 0.0
    %1570 = vmatpush2.msra.mxu0 0.0
    %1571 = vmatprep.subr.mxu0 0.0
    %1572 = vmatpush2.msra.mxu0 0.0
    %1573 = vmatprep.subr.mxu0 0.0
    %1574 = vmatpush2.msra.mxu0 0.0
    %1575 = vmatprep.subr.mxu0 0.0
    %1576 = vmatpush2.msra.mxu0 0.0
    %1577 = vmatprep.subr.mxu0 0.0
    %1578 = vmatpush2.msra.mxu0 0.0
    %1579 = vmatprep.subr.mxu0 0.0
    %1580 = vmatpush2.msra.mxu0 0.0
    %1581 = vmatprep.mubr.f32.mxu0 0.0
    %1582 = vmatmul.mubr.f32.gmra.mxu0 %v1515
    %v1583 = vpop.f32.mrf.mxu0
    %v1584 = vadd.f32 0.0, %v1583
    %v1585 = vpop.f32.mrf.mxu0
    %1586 = vdwg.mxu0
    %1589 = vrot.lane.b32.xlu0 %v1204, 8
    %v1590 = vpop.permute.xlu0 %1589
    %1591 = vrot.lane.b32.xlu0 %v1280, 8
    %v1592 = vpop.permute.xlu0 %1591
    %1597 = vrot.lane.b32.xlu0 %v1356, 16
    %v1598 = vpop.permute.xlu0 %1597
    %1599 = vrot.lane.b32.xlu0 %v1432, 16
    %v1600 = vpop.permute.xlu0 %1599
    %1605 = vrot.lane.b32.xlu0 %v1508, 24
    %v1606 = vpop.permute.xlu0 %1605
    %1607 = vrot.lane.b32.xlu0 %v1584, 24
    %v1608 = vpop.permute.xlu0 %1607
    %v1611 = vsel %vm284, %v1052, %v1590
    %v1612 = vsel %vm284, %v1128, %v1592
    %vm1613 = vcmask 130048
    %v1614 = vsel %vm1613, %v1611, %v1598
    %v1615 = vsel %vm1613, %v1612, %v1600
    %vm1616 = vcmask 195584
    %v1617 = vsel %vm1616, %v1614, %v1606
    %v1618 = vsel %vm1616, %v1615, %v1608
    %v1619 = vld [vmem:[%s4] sm:$0xff]
    %v1620 = vld [vmem:[%s4 + $0x8] sm:$0xff]
    %v1621 = vld [vmem:[%s4 + $0x10] sm:$0xff]
    %v1622 = vld [vmem:[%s4 + $0x18] sm:$0xff]
    %v1623 = vlaneseq
    %v1624 = vshrl.u32 %v1623, 7
    %v1625 = vsub.s32 3, %v1624
    %v1626 = vrot.slane %v68, %v1625
    %v1628 = vsel %vm69, %v1617, 0
    %v1631 = vsel %vm69, %v1618, 0
    %1633 = vmatprep.subr.mxu0 0.0
    %1634 = vmatpush1.msra.mxu0 0.0
    %1635 = vmatprep.subr.mxu0 0.0
    %1636 = vmatpush1.msra.mxu0 0.0
    %1637 = vmatprep.subr.mxu0 0.0
    %1638 = vmatpush1.msra.mxu0 0.0
    %1639 = vmatprep.subr.mxu0 0.0
    %1640 = vmatpush1.msra.mxu0 0.0
    %1641 = vmatprep.subr.mxu0 0.0
    %1642 = vmatpush1.msra.mxu0 0.0
    %1643 = vmatprep.subr.mxu0 0.0
    %1644 = vmatpush1.msra.mxu0 0.0
    %1645 = vmatprep.subr.mxu0 0.0
    %1646 = vmatpush1.msra.mxu0 0.0
    %1647 = vmatprep.subr.mxu0 0.0
    %1648 = vmatpush1.msra.mxu0 0.0
    %1649 = vmatprep.subr.mxu0 0.0
    %1650 = vmatpush1.msra.mxu0 0.0
    %1651 = vmatprep.subr.mxu0 0.0
    %1652 = vmatpush1.msra.mxu0 0.0
    %1653 = vmatprep.subr.mxu0 0.0
    %1654 = vmatpush1.msra.mxu0 0.0
    %1655 = vmatprep.subr.mxu0 0.0
    %1656 = vmatpush1.msra.mxu0 0.0
    %1657 = vmatprep.subr.mxu0 0.0
    %1658 = vmatpush1.msra.mxu0 %v1622
    %1659 = vmatprep.subr.mxu0 0.0
    %1660 = vmatpush1.msra.mxu0 %v1621
    %1661 = vmatprep.subr.mxu0 0.0
    %1662 = vmatpush1.msra.mxu0 %v1620
    %1663 = vmatprep.subr.mxu0 0.0
    %1664 = vmatpush1.msra.mxu0 %v1619
    %1665 = vmatprep.subr.mxu0 0.0
    %1666 = vmatpush2.msra.mxu0 0.0
    %1667 = vmatprep.subr.mxu0 0.0
    %1668 = vmatpush2.msra.mxu0 0.0
    %1669 = vmatprep.subr.mxu0 0.0
    %1670 = vmatpush2.msra.mxu0 0.0
    %1671 = vmatprep.subr.mxu0 0.0
    %1672 = vmatpush2.msra.mxu0 0.0
    %1673 = vmatprep.subr.mxu0 0.0
    %1674 = vmatpush2.msra.mxu0 0.0
    %1675 = vmatprep.subr.mxu0 0.0
    %1676 = vmatpush2.msra.mxu0 0.0
    %1677 = vmatprep.subr.mxu0 0.0
    %1678 = vmatpush2.msra.mxu0 0.0
    %1679 = vmatprep.subr.mxu0 0.0
    %1680 = vmatpush2.msra.mxu0 0.0
    %1681 = vmatprep.subr.mxu0 0.0
    %1682 = vmatpush2.msra.mxu0 0.0
    %1683 = vmatprep.subr.mxu0 0.0
    %1684 = vmatpush2.msra.mxu0 0.0
    %1685 = vmatprep.subr.mxu0 0.0
    %1686 = vmatpush2.msra.mxu0 0.0
    %1687 = vmatprep.subr.mxu0 0.0
    %1688 = vmatpush2.msra.mxu0 0.0
    %1689 = vmatprep.subr.mxu0 0.0
    %1690 = vmatpush2.msra.mxu0 0.0
    %1691 = vmatprep.subr.mxu0 0.0
    %1692 = vmatpush2.msra.mxu0 0.0
    %1693 = vmatprep.subr.mxu0 0.0
    %1694 = vmatpush2.msra.mxu0 0.0
    %1695 = vmatprep.subr.mxu0 0.0
    %1696 = vmatpush2.msra.mxu0 0.0
    %1697 = vmatprep.mubr.f32.mxu0 0.0
    %1698 = vmatmul.mubr.f32.gmra.mxu0 %v1628
    %v1699 = vpop.f32.mrf.mxu0
    %v1700 = vadd.f32 %v1626, %v1699
    %v1701 = vpop.f32.mrf.mxu0
    %1702 = vmatprep.mubr.f32.mxu0 0.0
    %1703 = vmatmul.mubr.f32.gmra.mxu0 %v1631
    %v1704 = vpop.f32.mrf.mxu0
    %v1705 = vadd.f32 %v1626, %v1704
    %v1706 = vpop.f32.mrf.mxu0
    %1707 = vdwg.mxu0
    %v1708 = vadd.f32 %v66, %v1700
    %v1709 = vadd.f32 %v67, %v1705
    %v1710 = vsel %vm69, %v1708, 0.0
    %1711 = vadd.xlane.f32.xlu0 %v1710
    %v1712 = vpop.xlane.xlu0 %1711
    %v1713 = vmul.f32 %v1712, %v76
    %v1714 = vsub.f32 %v1708, %v1713
    %v1715 = vmul.f32 %v1714, %v1714
    %v1716 = vsel %vm69, %v1715, 0.0
    %1717 = vadd.xlane.f32.xlu0 %v1716
    %v1718 = vpop.xlane.xlu0 %1717
    %v1719 = vmul.f32 %v1718, 0.032258064
    %v1720 = vrsqrt.pop %v1719
    %v1721 = vmul.f32 %v1719, %v1720
    %vm1722 = vcmp.eq.f32.partialorder %v1719, inf
    %v1723 = vsel %vm1722, %v1719, %v1721
    %vm1724 = vcmp.eq.f32.partialorder %v1719, 0.0
    %v1725 = vand.u32 %v1719, 2147483648
    %v1726 = vsel %vm1724, %v1725, %v1723
    %v1727 = vlaneseq
    %v1728 = vshrl.u32 %v1727, 7
    %v1729 = vsub.s32 4, %v1728
    %v1730 = vrot.slane %v68, %v1729
    %v1731 = vmul.f32 %v1730, %v1714
    %v1732 = vadd.f32 %v1726, 1e-06
    %v1733 = vrcp.pop %v1732
    %v1734 = vmul.f32 %v1731, %v1733
    %v1735 = vlaneseq
    %v1736 = vshrl.u32 %v1735, 7
    %v1737 = vsub.s32 5, %v1736
    %v1738 = vrot.slane %v68, %v1737
    %v1739 = vadd.f32 %v1734, %v1738
    %v1740 = vld [vmem:[%s5] sm:$0xff]
    %v1741 = vld [vmem:[%s5 + $0x8] sm:$0xff]
    %v1742 = vld [vmem:[%s5 + $0x10] sm:$0xff]
    %v1743 = vld [vmem:[%s5 + $0x18] sm:$0xff]
    %v1744 = vlaneseq
    %v1745 = vshrl.u32 %v1744, 7
    %v1746 = vsub.s32 6, %v1745
    %v1747 = vrot.slane %v68, %v1746
    %v1749 = vsel %vm69, %v1739, 0
    %1751 = vmatprep.subr.mxu0 0.0
    %1752 = vmatpush1.msra.mxu0 0.0
    %1753 = vmatprep.subr.mxu0 0.0
    %1754 = vmatpush1.msra.mxu0 0.0
    %1755 = vmatprep.subr.mxu0 0.0
    %1756 = vmatpush1.msra.mxu0 0.0
    %1757 = vmatprep.subr.mxu0 0.0
    %1758 = vmatpush1.msra.mxu0 0.0
    %1759 = vmatprep.subr.mxu0 0.0
    %1760 = vmatpush1.msra.mxu0 0.0
    %1761 = vmatprep.subr.mxu0 0.0
    %1762 = vmatpush1.msra.mxu0 0.0
    %1763 = vmatprep.subr.mxu0 0.0
    %1764 = vmatpush1.msra.mxu0 0.0
    %1765 = vmatprep.subr.mxu0 0.0
    %1766 = vmatpush1.msra.mxu0 0.0
    %1767 = vmatprep.subr.mxu0 0.0
    %1768 = vmatpush1.msra.mxu0 0.0
    %1769 = vmatprep.subr.mxu0 0.0
    %1770 = vmatpush1.msra.mxu0 0.0
    %1771 = vmatprep.subr.mxu0 0.0
    %1772 = vmatpush1.msra.mxu0 0.0
    %1773 = vmatprep.subr.mxu0 0.0
    %1774 = vmatpush1.msra.mxu0 0.0
    %1775 = vmatprep.subr.mxu0 0.0
    %1776 = vmatpush1.msra.mxu0 %v1743
    %1777 = vmatprep.subr.mxu0 0.0
    %1778 = vmatpush1.msra.mxu0 %v1742
    %1779 = vmatprep.subr.mxu0 0.0
    %1780 = vmatpush1.msra.mxu0 %v1741
    %1781 = vmatprep.subr.mxu0 0.0
    %1782 = vmatpush1.msra.mxu0 %v1740
    %1783 = vmatprep.subr.mxu0 0.0
    %1784 = vmatpush2.msra.mxu0 0.0
    %1785 = vmatprep.subr.mxu0 0.0
    %1786 = vmatpush2.msra.mxu0 0.0
    %1787 = vmatprep.subr.mxu0 0.0
    %1788 = vmatpush2.msra.mxu0 0.0
    %1789 = vmatprep.subr.mxu0 0.0
    %1790 = vmatpush2.msra.mxu0 0.0
    %1791 = vmatprep.subr.mxu0 0.0
    %1792 = vmatpush2.msra.mxu0 0.0
    %1793 = vmatprep.subr.mxu0 0.0
    %1794 = vmatpush2.msra.mxu0 0.0
    %1795 = vmatprep.subr.mxu0 0.0
    %1796 = vmatpush2.msra.mxu0 0.0
    %1797 = vmatprep.subr.mxu0 0.0
    %1798 = vmatpush2.msra.mxu0 0.0
    %1799 = vmatprep.subr.mxu0 0.0
    %1800 = vmatpush2.msra.mxu0 0.0
    %1801 = vmatprep.subr.mxu0 0.0
    %1802 = vmatpush2.msra.mxu0 0.0
    %1803 = vmatprep.subr.mxu0 0.0
    %1804 = vmatpush2.msra.mxu0 0.0
    %1805 = vmatprep.subr.mxu0 0.0
    %1806 = vmatpush2.msra.mxu0 0.0
    %1807 = vmatprep.subr.mxu0 0.0
    %1808 = vmatpush2.msra.mxu0 0.0
    %1809 = vmatprep.subr.mxu0 0.0
    %1810 = vmatpush2.msra.mxu0 0.0
    %1811 = vmatprep.subr.mxu0 0.0
    %1812 = vmatpush2.msra.mxu0 0.0
    %1813 = vmatprep.subr.mxu0 0.0
    %1814 = vmatpush2.msra.mxu0 0.0
    %1815 = vmatprep.mubr.f32.mxu0 0.0
    %1816 = vmatmul.mubr.f32.gmra.mxu0 %v1749
    %v1817 = vpop.f32.mrf.mxu0
    %v1818 = vadd.f32 %v1747, %v1817
    %v1819 = vpop.f32.mrf.mxu0
    %1820 = vdwg.mxu0
    %v1821 = vmul.f32 %v1818, 0.5
    %v1822 = vmul.f32 %v1818, %v1818
    %v1823 = vmul.f32 %v1818, %v1822
    %v1824 = vmul.f32 %v1823, 0.044715
    %v1825 = vadd.f32 %v1818, %v1824
    %v1826 = vmul.f32 %v1825, 0.7978846
    %v1827 = vtanh.pop %v1826
    %v1828 = vadd.f32 %v1827, 1.0
    %v1829 = vmul.f32 %v1821, %v1828
    %v1830 = vld [vmem:[%s6] sm:$0xff]
    %v1831 = vld [vmem:[%s6 + $0x8] sm:$0xff]
    %v1832 = vld [vmem:[%s6 + $0x10] sm:$0xff]
    %v1833 = vld [vmem:[%s6 + $0x18] sm:$0xff]
    %v1834 = vld [vmem:[%s6 + $0x20] sm:$0xff]
    %v1835 = vld [vmem:[%s6 + $0x28] sm:$0xff]
    %v1836 = vld [vmem:[%s6 + $0x30] sm:$0xff]
    %v1837 = vld [vmem:[%s6 + $0x38] sm:$0xff]
    %v1838 = vlaneseq
    %v1839 = vshrl.u32 %v1838, 7
    %v1840 = vsub.s32 7, %v1839
    %v1841 = vrot.slane %v68, %v1840
    %vm1842 = vcmask 523264
    %v1844 = vsel %vm1842, %v1829, 0
    %1846 = vmatprep.subr.mxu0 0.0
    %1847 = vmatpush1.msra.mxu0 0.0
    %1848 = vmatprep.subr.mxu0 0.0
    %1849 = vmatpush1.msra.mxu0 0.0
    %1850 = vmatprep.subr.mxu0 0.0
    %1851 = vmatpush1.msra.mxu0 0.0
    %1852 = vmatprep.subr.mxu0 0.0
    %1853 = vmatpush1.msra.mxu0 0.0
    %1854 = vmatprep.subr.mxu0 0.0
    %1855 = vmatpush1.msra.mxu0 0.0
    %1856 = vmatprep.subr.mxu0 0.0
    %1857 = vmatpush1.msra.mxu0 0.0
    %1858 = vmatprep.subr.mxu0 0.0
    %1859 = vmatpush1.msra.mxu0 0.0
    %1860 = vmatprep.subr.mxu0 0.0
    %1861 = vmatpush1.msra.mxu0 0.0
    %1862 = vmatprep.subr.mxu0 0.0
    %1863 = vmatpush1.msra.mxu0 %v1837
    %1864 = vmatprep.subr.mxu0 0.0
    %1865 = vmatpush1.msra.mxu0 %v1836
    %1866 = vmatprep.subr.mxu0 0.0
    %1867 = vmatpush1.msra.mxu0 %v1835
    %1868 = vmatprep.subr.mxu0 0.0
    %1869 = vmatpush1.msra.mxu0 %v1834
    %1870 = vmatprep.subr.mxu0 0.0
    %1871 = vmatpush1.msra.mxu0 %v1833
    %1872 = vmatprep.subr.mxu0 0.0
    %1873 = vmatpush1.msra.mxu0 %v1832
    %1874 = vmatprep.subr.mxu0 0.0
    %1875 = vmatpush1.msra.mxu0 %v1831
    %1876 = vmatprep.subr.mxu0 0.0
    %1877 = vmatpush1.msra.mxu0 %v1830
    %1878 = vmatprep.subr.mxu0 0.0
    %1879 = vmatpush2.msra.mxu0 0.0
    %1880 = vmatprep.subr.mxu0 0.0
    %1881 = vmatpush2.msra.mxu0 0.0
    %1882 = vmatprep.subr.mxu0 0.0
    %1883 = vmatpush2.msra.mxu0 0.0
    %1884 = vmatprep.subr.mxu0 0.0
    %1885 = vmatpush2.msra.mxu0 0.0
    %1886 = vmatprep.subr.mxu0 0.0
    %1887 = vmatpush2.msra.mxu0 0.0
    %1888 = vmatprep.subr.mxu0 0.0
    %1889 = vmatpush2.msra.mxu0 0.0
    %1890 = vmatprep.subr.mxu0 0.0
    %1891 = vmatpush2.msra.mxu0 0.0
    %1892 = vmatprep.subr.mxu0 0.0
    %1893 = vmatpush2.msra.mxu0 0.0
    %1894 = vmatprep.subr.mxu0 0.0
    %1895 = vmatpush2.msra.mxu0 0.0
    %1896 = vmatprep.subr.mxu0 0.0
    %1897 = vmatpush2.msra.mxu0 0.0
    %1898 = vmatprep.subr.mxu0 0.0
    %1899 = vmatpush2.msra.mxu0 0.0
    %1900 = vmatprep.subr.mxu0 0.0
    %1901 = vmatpush2.msra.mxu0 0.0
    %1902 = vmatprep.subr.mxu0 0.0
    %1903 = vmatpush2.msra.mxu0 0.0
    %1904 = vmatprep.subr.mxu0 0.0
    %1905 = vmatpush2.msra.mxu0 0.0
    %1906 = vmatprep.subr.mxu0 0.0
    %1907 = vmatpush2.msra.mxu0 0.0
    %1908 = vmatprep.subr.mxu0 0.0
    %1909 = vmatpush2.msra.mxu0 0.0
    %1910 = vmatprep.mubr.f32.mxu0 0.0
    %1911 = vmatmul.mubr.f32.gmra.mxu0 %v1844
    %v1912 = vpop.f32.mrf.mxu0
    %v1913 = vadd.f32 %v1841, %v1912
    %v1914 = vpop.f32.mrf.mxu0
    %1915 = vdwg.mxu0
    %v1916 = vadd.f32 %v1708, %v1913
    %v1917 = vadd.f32 %v1709, %v1913
    %1918 = vst.msk [vmem:[#allocation8] sm:$0xff] %vm69, %v1916
    %1919 = vst.msk [vmem:[#allocation8 + $0x8] sm:$0xff] %vm69, %v1917
    // Predicated region
    $region42: #{tpu_custom_call.1} parent=1 // pred_check
      _
    $region43: #{tpu_custom_call.1} parent=1 // pred_check_branch
      %1921 = sbr.rel (0) target = $region45
    $region44: #{tpu_custom_call.1} parent=1 // pred_region
      %s1923 = ssub.s32 256, 256
      %1924 = vsyncadd [#allocation4], %s1923
      %s1925 = sshll.u32 [#allocation8], 4
      %s1926 = int_to_ptr.vmem [resolvable:$true] %s1925
      %1931 = dma.vmem_to_hbm [thread:$0]  %s1926, 256, %s7, [#allocation4], 128, 128, 8
    $region45: #{tpu_custom_call.1} parent=1 // pred_fallthru
      _
    // Predicated region
    $region46: #{tpu_custom_call.1} parent=1 // pred_check
      _
    $region47: #{tpu_custom_call.1} parent=1 // pred_check_branch
      %1933 = sbr.rel (0) target = $region49
    $region48: #{tpu_custom_call.1} parent=1 // pred_region
      %1934 = dma.done [#allocation4], 256
    $region49: #{tpu_custom_call.1} parent=1 // pred_fallthru
      _
    %1935 = vsyncpa [#allocation3], 1
    %1936 = vsyncpa [#allocation6], 1
    %1937 = vsyncpa [#allocation4], 1

</llo_original>
